<compile_context>
chip_gen: v7x
topology: tpu7x:2x2x1
jax: 0.10.0
libtpu: 0.0.40
codegen_flags: <defaults>
</compile_context>

<pallas_src>
import functools

import jax
import jax.numpy as jnp
from jax import lax
from jax.experimental import pallas as pl
from jax.experimental.pallas import tpu as pltpu


# ----------------------------- configuration --------------------------------
SAMPLERATE = 16000
NFFT = 512
F_LOW = 80
F_HIGH = 250
W_P = 21
ALPHA_UP = 0.95
ALPHA_DOWN = 0.5
LAMBDA_VOICE = 2.0
LAMBDA_UNVOICE = 1.0

NBINS = NFFT // 2 + 1                        # 257 frequency bins
NPITCH = len(range(F_LOW, F_HIGH + 10, 10))  # 18 pitch candidates


def build_harmonic_matrix():
    """Fused harmonic template: [ft_re | ft_im | ones], shape (F, 2P+1).

    Mirrors BaseLoss.__init__: freqs = arange(f_low, f_high+10, 10),
    times = samplerate / freqs, f_t = exp(1j*outer(times, bins)*2*pi/nfft),
    f_t[:, :2] = 0.  The trailing ones column lets the kernel get the
    per-frame power sum from the same MXU pass as the correlations.
    """
    freqs = jnp.arange(F_LOW, F_HIGH + 10, 10, dtype=jnp.float32)      # (P,)
    times = SAMPLERATE / freqs                                          # (P,)
    bins = jnp.arange(NBINS, dtype=jnp.float32)                         # (F,)
    phase = jnp.outer(times, bins) * (2.0 * jnp.pi / NFFT)              # (P, F)
    ft_re = jnp.cos(phase).at[:, :2].set(0.0)
    ft_im = jnp.sin(phase).at[:, :2].set(0.0)
    ones = jnp.ones((1, NBINS), dtype=jnp.float32)
    # TODO(synk): the original pads f_t and unfolds w_p=21-wide bin windows for
    # the external (undefined) `pitch_detect`; the un-windowed harmonic
    # templates are a deterministic stand-in for the weight computation.
    return jnp.concatenate([ft_re, ft_im, ones], axis=0).T              # (F, 2P+1)


# ------------------------------- the kernel ----------------------------------
def weight_loss_kernel(loss_ref, cre_ref, cim_ref, ft_ref, out_ref, w_sc, *,
                       alpha_up, alpha_down, lam_v, lam_u):
    G, F, T = loss_ref.shape                     # native (speaker, freq, frame)
    C = ft_ref.shape[1]                          # 2P+1
    P = (C - 1) // 2

    ft = ft_ref[...]                             # (F, 2P+1)

    # ---- block-wide elementwise work on the whole (G, F, T) tile ------------
    cre = cre_ref[...]
    cim = cim_ref[...]
    sq = cre * cre + cim * cim                   # |X|^2
    power = sq + 1e-8                            # salience input (|X|^2 + eps)
    clean_abs = jnp.sqrt(sq)                     # |X| (no eps -> matches 5.0 gate)

    # per-frame |X| sum over frequency -> clean-frame gate, shape (G, 1, T)
    abs_sum = jnp.sum(clean_abs, axis=1, keepdims=True)
    clean_frames = abs_sum > 5.0                 # (G, 1, T) bool

    # ---- per-speaker fused harmonic matmul (frame-major output) -------------
    # Contract over F (dim 0 of both operands): (F,T) x (F,2P+1) -> (T,2P+1),
    # so corr_re / corr_im / frame power all come out of one MXU pass with no
    # materialized transpose of the clean tiles.
    tdims = (((0,), (0,)), ((), ()))
    raw_cols = []
    for g in range(G):
        corr = lax.dot_general(power[g], ft, tdims,
                               preferred_element_type=jnp.float32)   # (T, 2P+1)
        corr_re = corr[:, :P]
        corr_im = corr[:, P:2 * P]
        frame_pow = corr[:, 2 * P:2 * P + 1]                          # (T, 1)
        sal = jnp.sqrt(corr_re * corr_re + corr_im * corr_im)
        sal = sal * pl.reciprocal(frame_pow + 1e-8, approx=True)      # (T, P)
        raw_cols.append(jnp.max(sal, axis=1, keepdims=True))          # (T, 1)
    raw_tg = jnp.concatenate(raw_cols, axis=1)                        # (T, G)

    # ---- alpha_up / alpha_down smoothing: serial over T, all G lanes --------
    w_sc[...] = raw_tg

    def body(t, w_prev):
        r = w_sc[pl.ds(t, 1), :]                                      # (1, G)
        up = alpha_up * w_prev + (1.0 - alpha_up) * r
        dn = alpha_down * w_prev + (1.0 - alpha_down) * r
        w_new = jnp.where(r > w_prev, up, dn)
        w_sc[pl.ds(t, 1), :] = w_new
        return w_new

    # TODO(synk): verify the t=0 seed (w_prev = 0) against the reference
    # pitch_detect recurrence once that (undefined) function is available.
    init = jnp.zeros((1, G), jnp.float32)
    lax.fori_loop(0, T, body, init, unroll=True if T <= 64 else 8)
    weights_gt = jnp.transpose(w_sc[...])                             # (G, T)

    # ---- scale + in-kernel (F,T)->(T,F) transpose + store --------------------
    # voiced / unvoiced / background -> one per-frame factor, (1, T) row per
    # speaker (cheap sublane broadcast against the (F, T) loss tile).
    for g in range(G):
        fac = jnp.where(clean_frames[g],
                        jnp.where(weights_gt[g:g + 1, :] > 0.4, lam_v, lam_u),
                        1.0)                                          # (1, T)
        out_ref[g] = jnp.transpose(loss_ref[g] * fac).astype(out_ref.dtype)


# ------------------------------- the wrapper ---------------------------------
def _physical_vmem_bytes():
    """Best-effort per-core VMEM query; conservative fallback (v7x = 64 MiB)."""
    try:
        info = pltpu.get_tpu_info()
        return int(getattr(info, "vmem_capacity_bytes", 64 * 1024 * 1024))
    except Exception:
        return 64 * 1024 * 1024


def _speakers_per_block(n, t, f, vmem_budget, min_steps, max_g=64):
    """Largest divisor G of n (<= max_g) whose block footprint fits the VMEM
    budget, preferring choices that keep >= min_steps grid steps (megacore)."""
    # 4 arrays (loss, cre, cim, out) x f32 x 2 pipeline buffers, plus ~3 live
    # block-wide temporaries (sq/power/clean_abs) inside the kernel.
    bytes_per_speaker = (4 * 2 + 3) * f * t * 4
    divisors = [g for g in range(1, min(n, max_g) + 1) if n % g == 0]
    fitting = [g for g in divisors if g * bytes_per_speaker <= vmem_budget]
    if not fitting:
        # TODO(synk): for very long signals add a trailing "arbitrary" T-tile
        # grid axis that carries the (1, G) smoothing state in persistent
        # scratch, decoupling the VMEM footprint from T (matters on v7x 64 MiB).
        return 1
    with_steps = [g for g in fitting if n // g >= min_steps]
    return max(with_steps) if with_steps else max(fitting)


def weight_loss(loss_bsft, clean_re_bsft, clean_im_bsft):
    """loss, clean_{re,im}: (B, S, F, T) float32 -> (B, S, T, F) float32."""
    B, S, F, T = loss_bsft.shape
    assert F == NBINS
    N = B * S

    vmem_phys = _physical_vmem_bytes()
    if vmem_phys >= 100 * 1024 * 1024:      # v5e / v6e: 128 MiB VMEM, single TC
        vmem_limit = 100 * 1024 * 1024
        min_steps = 1                       # no megacore -> one big block is fine
    else:                                   # v7x-class: 64 MiB VMEM, 2 TCs
        vmem_limit = 48 * 1024 * 1024
        min_steps = 2                       # keep both TensorCores busy
    G = _speakers_per_block(N, T, F, int(vmem_limit * 0.85), min_steps)

    # All inputs stay in the original (F, T) layout; the (B, S) -> N folds are
    # free reshapes and there is NO wrapper-side transpose (the frame-major
    # output flip happens on the VMEM tile inside the kernel).
    loss_nft = loss_bsft.reshape(N, F, T)
    cre_nft = clean_re_bsft.reshape(N, F, T)
    cim_nft = clean_im_bsft.reshape(N, F, T)

    ft_aug = build_harmonic_matrix().astype(jnp.float32)              # (F, 2P+1)
    C = ft_aug.shape[1]

    kernel = functools.partial(
        weight_loss_kernel,
        alpha_up=ALPHA_UP, alpha_down=ALPHA_DOWN,
        lam_v=LAMBDA_VOICE, lam_u=LAMBDA_UNVOICE)

    nat_spec = pl.BlockSpec((G, F, T), lambda i: (i, 0, 0))           # loss/clean
    out_spec = pl.BlockSpec((G, T, F), lambda i: (i, 0, 0))           # frame-major
    tmpl_spec = pl.BlockSpec((F, C), lambda i: (0, 0))                # templates

    out = pl.pallas_call(
        kernel,
        out_shape=jax.ShapeDtypeStruct((N, T, F), jnp.float32),
        grid_spec=pltpu.PrefetchScalarGridSpec(
            num_scalar_prefetch=0,
            grid=(N // G,),
            in_specs=[nat_spec, nat_spec, nat_spec, tmpl_spec],
            out_specs=out_spec,
            scratch_shapes=[pltpu.VMEM((T, G), jnp.float32)],
        ),
        compiler_params=pltpu.CompilerParams(
            dimension_semantics=("parallel",),
            vmem_limit_bytes=vmem_limit,
        ),
    )(loss_nft, cre_nft, cim_nft, ft_aug)
    return out.reshape(B, S, T, F)


# --------------------------------- main ---------------------------------------
if __name__ == "__main__":
    # TODO(synk): BaseLoss.forward raises NotImplementedError; the concrete
    # compute in the module is weight_loss(), which is what this kernel runs.
    B, S, F, T = 2, 2, NBINS, 8

    key = jax.random.PRNGKey(0)
    k1, k2, k3 = jax.random.split(key, 3)
    loss = jnp.abs(jax.random.normal(k1, (B, S, F, T), dtype=jnp.float32))
    clean_re = jax.random.normal(k2, (B, S, F, T), dtype=jnp.float32)
    clean_im = jax.random.normal(k3, (B, S, F, T), dtype=jnp.float32)
    # make frame 0 "silent" so the clean_frames gate exercises both branches
    clean_re = clean_re.at[:, :, :, 0].multiply(0.001)
    clean_im = clean_im.at[:, :, :, 0].multiply(0.001)

    out = jax.jit(weight_loss)(loss, clean_re, clean_im)
    out = jax.block_until_ready(out)
    assert out.shape == (B, S, T, F) and out.dtype == jnp.float32
    assert bool(jnp.all(jnp.isfinite(out)))
    print("KERNEL_OK")
</pallas_src>

<mosaic_0001>
module attributes {stable_mosaic.version = 11 : i64} {
  func.func @weight_loss_kernel(%arg0: i32, %arg1: memref<2x257x8xf32, #tpu.memory_space<vmem>>, %arg2: memref<2x257x8xf32, #tpu.memory_space<vmem>>, %arg3: memref<2x257x8xf32, #tpu.memory_space<vmem>>, %arg4: memref<257x37xf32, #tpu.memory_space<vmem>>, %arg5: memref<2x8x257xf32, #tpu.memory_space<vmem>>, %arg6: memref<8x2xf32, #tpu.memory_space<vmem>>) attributes {dimension_semantics = [#tpu.dimension_semantics<parallel>], iteration_bounds = array<i64: 2>, scalar_prefetch = 0 : i64, scratch_operands = 1 : i64, tpu.core_type = #tpu.core_type<tc>, window_params = [{transform_indices = @transform_0, window_bounds = array<i64: 2, 257, 8>}, {transform_indices = @transform_1, window_bounds = array<i64: 2, 257, 8>}, {transform_indices = @transform_2, window_bounds = array<i64: 2, 257, 8>}, {pipeline_mode = #tpu.pipeline_mode<synchronous>, transform_indices = @transform_3, window_bounds = array<i64: 257, 37>}, {transform_indices = @transform_4, window_bounds = array<i64: 2, 8, 257>}]} {
    %c0 = arith.constant 0 : index
    %c0_0 = arith.constant 0 : index
    %0 = vector.load %arg4[%c0, %c0_0] : memref<257x37xf32, #tpu.memory_space<vmem>>, vector<257x37xf32>
    %c0_1 = arith.constant 0 : index
    %c0_2 = arith.constant 0 : index
    %c0_3 = arith.constant 0 : index
    %1 = vector.load %arg2[%c0_1, %c0_2, %c0_3] : memref<2x257x8xf32, #tpu.memory_space<vmem>>, vector<2x257x8xf32>
    %c0_4 = arith.constant 0 : index
    %c0_5 = arith.constant 0 : index
    %c0_6 = arith.constant 0 : index
    %2 = vector.load %arg3[%c0_4, %c0_5, %c0_6] : memref<2x257x8xf32, #tpu.memory_space<vmem>>, vector<2x257x8xf32>
    %3 = arith.mulf %1, %1 : vector<2x257x8xf32>
    %4 = arith.mulf %2, %2 : vector<2x257x8xf32>
    %5 = arith.addf %3, %4 : vector<2x257x8xf32>
    %cst = arith.constant 9.99999993E-9 : f32
    %6 = vector.broadcast %cst : f32 to vector<2x257x8xf32>
    %7 = arith.addf %5, %6 : vector<2x257x8xf32>
    %8 = math.sqrt %5 : vector<2x257x8xf32>
    %cst_7 = arith.constant dense<0.000000e+00> : vector<2x8xf32>
    %9 = vector.multi_reduction <add>, %8, %cst_7 [1] : vector<2x257x8xf32> to vector<2x8xf32>
    %10 = vector.shape_cast %9 : vector<2x8xf32> to vector<2x1x8xf32>
    %cst_8 = arith.constant 5.000000e+00 : f32
    %11 = vector.broadcast %cst_8 : f32 to vector<2x1x8xf32>
    %12 = arith.cmpf ogt, %10, %11 : vector<2x1x8xf32>
    %13 = vector.extract_strided_slice %7 {offsets = [0, 0, 0], sizes = [1, 257, 8], strides = [1, 1, 1]} : vector<2x257x8xf32> to vector<1x257x8xf32>
    %14 = vector.shape_cast %13 : vector<1x257x8xf32> to vector<257x8xf32>
    %cst_9 = arith.constant dense<0.000000e+00> : vector<8x37xf32>
    %15 = tpu.matmul %14, %0, %cst_9 {dimension_numbers = #tpu.dot_dimension_numbers<[0], [0], [1], [1], [0, 1, 1, 1], [], []>} : vector<257x8xf32>, vector<257x37xf32>, vector<8x37xf32> -> vector<8x37xf32>
    %16 = vector.extract_strided_slice %15 {offsets = [0, 0], sizes = [8, 18], strides = [1, 1]} : vector<8x37xf32> to vector<8x18xf32>
    %17 = vector.extract_strided_slice %15 {offsets = [0, 18], sizes = [8, 18], strides = [1, 1]} : vector<8x37xf32> to vector<8x18xf32>
    %18 = vector.extract_strided_slice %15 {offsets = [0, 36], sizes = [8, 1], strides = [1, 1]} : vector<8x37xf32> to vector<8x1xf32>
    %19 = arith.mulf %16, %16 : vector<8x18xf32>
    %20 = arith.mulf %17, %17 : vector<8x18xf32>
    %21 = arith.addf %19, %20 : vector<8x18xf32>
    %22 = math.sqrt %21 : vector<8x18xf32>
    %cst_10 = arith.constant 9.99999993E-9 : f32
    %23 = vector.broadcast %cst_10 : f32 to vector<8x1xf32>
    %24 = arith.addf %18, %23 : vector<8x1xf32>
    %25 = tpu.reciprocal %24 {approx = true} : vector<8x1xf32> -> vector<8x1xf32>
    %26 = vector.broadcast %25 : vector<8x1xf32> to vector<8x18xf32>
    %27 = arith.mulf %22, %26 : vector<8x18xf32>
    %cst_11 = arith.constant dense<0xFF800000> : vector<8xf32>
    %28 = vector.multi_reduction <maximumf>, %27, %cst_11 [1] : vector<8x18xf32> to vector<8xf32>
    %29 = vector.shape_cast %28 : vector<8xf32> to vector<8x1xf32>
    %30 = vector.extract_strided_slice %7 {offsets = [1, 0, 0], sizes = [1, 257, 8], strides = [1, 1, 1]} : vector<2x257x8xf32> to vector<1x257x8xf32>
    %31 = vector.shape_cast %30 : vector<1x257x8xf32> to vector<257x8xf32>
    %cst_12 = arith.constant dense<0.000000e+00> : vector<8x37xf32>
    %32 = tpu.matmul %31, %0, %cst_12 {dimension_numbers = #tpu.dot_dimension_numbers<[0], [0], [1], [1], [0, 1, 1, 1], [], []>} : vector<257x8xf32>, vector<257x37xf32>, vector<8x37xf32> -> vector<8x37xf32>
    %33 = vector.extract_strided_slice %32 {offsets = [0, 0], sizes = [8, 18], strides = [1, 1]} : vector<8x37xf32> to vector<8x18xf32>
    %34 = vector.extract_strided_slice %32 {offsets = [0, 18], sizes = [8, 18], strides = [1, 1]} : vector<8x37xf32> to vector<8x18xf32>
    %35 = vector.extract_strided_slice %32 {offsets = [0, 36], sizes = [8, 1], strides = [1, 1]} : vector<8x37xf32> to vector<8x1xf32>
    %36 = arith.mulf %33, %33 : vector<8x18xf32>
    %37 = arith.mulf %34, %34 : vector<8x18xf32>
    %38 = arith.addf %36, %37 : vector<8x18xf32>
    %39 = math.sqrt %38 : vector<8x18xf32>
    %cst_13 = arith.constant 9.99999993E-9 : f32
    %40 = vector.broadcast %cst_13 : f32 to vector<8x1xf32>
    %41 = arith.addf %35, %40 : vector<8x1xf32>
    %42 = tpu.reciprocal %41 {approx = true} : vector<8x1xf32> -> vector<8x1xf32>
    %43 = vector.broadcast %42 : vector<8x1xf32> to vector<8x18xf32>
    %44 = arith.mulf %39, %43 : vector<8x18xf32>
    %cst_14 = arith.constant dense<0xFF800000> : vector<8xf32>
    %45 = vector.multi_reduction <maximumf>, %44, %cst_14 [1] : vector<8x18xf32> to vector<8xf32>
    %46 = vector.shape_cast %45 : vector<8xf32> to vector<8x1xf32>
    %47 = tpu.concatenate %29, %46 in 1 : vector<8x1xf32>, vector<8x1xf32> -> vector<8x2xf32>
    %c0_15 = arith.constant 0 : index
    %c0_16 = arith.constant 0 : index
    %48 = vector.load %arg6[%c0_15, %c0_16] : memref<8x2xf32, #tpu.memory_space<vmem>>, vector<8x2xf32>
    tpu.vector_store %arg6[%c0_15, %c0_16], %47 {strides = array<i32>} : memref<8x2xf32, #tpu.memory_space<vmem>>, vector<8x2xf32>,
    %cst_17 = arith.constant 0.000000e+00 : f32
    %49 = vector.broadcast %cst_17 : f32 to vector<1x2xf32>
    %c0_i32 = arith.constant 0 : i32
    %50 = arith.index_cast %c0_i32 : i32 to index
    %c0_18 = arith.constant 0 : index
    %51 = vector.load %arg6[%50, %c0_18] : memref<8x2xf32, #tpu.memory_space<vmem>>, vector<1x2xf32>
    %cst_19 = arith.constant 0.949999988 : f32
    %52 = vector.broadcast %cst_19 : f32 to vector<1x2xf32>
    %53 = arith.mulf %52, %49 : vector<1x2xf32>
    %cst_20 = arith.constant 5.000000e-02 : f32
    %54 = vector.broadcast %cst_20 : f32 to vector<1x2xf32>
    %55 = arith.mulf %54, %51 : vector<1x2xf32>
    %56 = arith.addf %53, %55 : vector<1x2xf32>
    %cst_21 = arith.constant 5.000000e-01 : f32
    %57 = vector.broadcast %cst_21 : f32 to vector<1x2xf32>
    %58 = arith.mulf %57, %49 : vector<1x2xf32>
    %cst_22 = arith.constant 5.000000e-01 : f32
    %59 = vector.broadcast %cst_22 : f32 to vector<1x2xf32>
    %60 = arith.mulf %59, %51 : vector<1x2xf32>
    %61 = arith.addf %58, %60 : vector<1x2xf32>
    %62 = arith.cmpf ogt, %51, %49 : vector<1x2xf32>
    %63 = arith.select %62, %56, %61 : vector<1x2xi1>, vector<1x2xf32>
    %64 = arith.index_cast %c0_i32 : i32 to index
    %c0_23 = arith.constant 0 : index
    %65 = vector.load %arg6[%64, %c0_23] : memref<8x2xf32, #tpu.memory_space<vmem>>, vector<1x2xf32>
    tpu.vector_store %arg6[%64, %c0_23], %63 {strides = array<i32>} : memref<8x2xf32, #tpu.memory_space<vmem>>, vector<1x2xf32>,
    %c1_i32 = arith.constant 1 : i32
    %66 = arith.index_cast %c1_i32 : i32 to index
    %c0_24 = arith.constant 0 : index
    %67 = vector.load %arg6[%66, %c0_24] : memref<8x2xf32, #tpu.memory_space<vmem>>, vector<1x2xf32>
    %cst_25 = arith.constant 0.949999988 : f32
    %68 = vector.broadcast %cst_25 : f32 to vector<1x2xf32>
    %69 = arith.mulf %68, %63 : vector<1x2xf32>
    %cst_26 = arith.constant 5.000000e-02 : f32
    %70 = vector.broadcast %cst_26 : f32 to vector<1x2xf32>
    %71 = arith.mulf %70, %67 : vector<1x2xf32>
    %72 = arith.addf %69, %71 : vector<1x2xf32>
    %cst_27 = arith.constant 5.000000e-01 : f32
    %73 = vector.broadcast %cst_27 : f32 to vector<1x2xf32>
    %74 = arith.mulf %73, %63 : vector<1x2xf32>
    %cst_28 = arith.constant 5.000000e-01 : f32
    %75 = vector.broadcast %cst_28 : f32 to vector<1x2xf32>
    %76 = arith.mulf %75, %67 : vector<1x2xf32>
    %77 = arith.addf %74, %76 : vector<1x2xf32>
    %78 = arith.cmpf ogt, %67, %63 : vector<1x2xf32>
    %79 = arith.select %78, %72, %77 : vector<1x2xi1>, vector<1x2xf32>
    %80 = arith.index_cast %c1_i32 : i32 to index
    %c0_29 = arith.constant 0 : index
    %81 = vector.load %arg6[%80, %c0_29] : memref<8x2xf32, #tpu.memory_space<vmem>>, vector<1x2xf32>
    tpu.vector_store %arg6[%80, %c0_29], %79 {strides = array<i32>} : memref<8x2xf32, #tpu.memory_space<vmem>>, vector<1x2xf32>,
    %c2_i32 = arith.constant 2 : i32
    %82 = arith.index_cast %c2_i32 : i32 to index
    %c0_30 = arith.constant 0 : index
    %83 = vector.load %arg6[%82, %c0_30] : memref<8x2xf32, #tpu.memory_space<vmem>>, vector<1x2xf32>
    %cst_31 = arith.constant 0.949999988 : f32
    %84 = vector.broadcast %cst_31 : f32 to vector<1x2xf32>
    %85 = arith.mulf %84, %79 : vector<1x2xf32>
    %cst_32 = arith.constant 5.000000e-02 : f32
    %86 = vector.broadcast %cst_32 : f32 to vector<1x2xf32>
    %87 = arith.mulf %86, %83 : vector<1x2xf32>
    %88 = arith.addf %85, %87 : vector<1x2xf32>
    %cst_33 = arith.constant 5.000000e-01 : f32
    %89 = vector.broadcast %cst_33 : f32 to vector<1x2xf32>
    %90 = arith.mulf %89, %79 : vector<1x2xf32>
    %cst_34 = arith.constant 5.000000e-01 : f32
    %91 = vector.broadcast %cst_34 : f32 to vector<1x2xf32>
    %92 = arith.mulf %91, %83 : vector<1x2xf32>
    %93 = arith.addf %90, %92 : vector<1x2xf32>
    %94 = arith.cmpf ogt, %83, %79 : vector<1x2xf32>
    %95 = arith.select %94, %88, %93 : vector<1x2xi1>, vector<1x2xf32>
    %96 = arith.index_cast %c2_i32 : i32 to index
    %c0_35 = arith.constant 0 : index
    %97 = vector.load %arg6[%96, %c0_35] : memref<8x2xf32, #tpu.memory_space<vmem>>, vector<1x2xf32>
    tpu.vector_store %arg6[%96, %c0_35], %95 {strides = array<i32>} : memref<8x2xf32, #tpu.memory_space<vmem>>, vector<1x2xf32>,
    %c3_i32 = arith.constant 3 : i32
    %98 = arith.index_cast %c3_i32 : i32 to index
    %c0_36 = arith.constant 0 : index
    %99 = vector.load %arg6[%98, %c0_36] : memref<8x2xf32, #tpu.memory_space<vmem>>, vector<1x2xf32>
    %cst_37 = arith.constant 0.949999988 : f32
    %100 = vector.broadcast %cst_37 : f32 to vector<1x2xf32>
    %101 = arith.mulf %100, %95 : vector<1x2xf32>
    %cst_38 = arith.constant 5.000000e-02 : f32
    %102 = vector.broadcast %cst_38 : f32 to vector<1x2xf32>
    %103 = arith.mulf %102, %99 : vector<1x2xf32>
    %104 = arith.addf %101, %103 : vector<1x2xf32>
    %cst_39 = arith.constant 5.000000e-01 : f32
    %105 = vector.broadcast %cst_39 : f32 to vector<1x2xf32>
    %106 = arith.mulf %105, %95 : vector<1x2xf32>
    %cst_40 = arith.constant 5.000000e-01 : f32
    %107 = vector.broadcast %cst_40 : f32 to vector<1x2xf32>
    %108 = arith.mulf %107, %99 : vector<1x2xf32>
    %109 = arith.addf %106, %108 : vector<1x2xf32>
    %110 = arith.cmpf ogt, %99, %95 : vector<1x2xf32>
    %111 = arith.select %110, %104, %109 : vector<1x2xi1>, vector<1x2xf32>
    %112 = arith.index_cast %c3_i32 : i32 to index
    %c0_41 = arith.constant 0 : index
    %113 = vector.load %arg6[%112, %c0_41] : memref<8x2xf32, #tpu.memory_space<vmem>>, vector<1x2xf32>
    tpu.vector_store %arg6[%112, %c0_41], %111 {strides = array<i32>} : memref<8x2xf32, #tpu.memory_space<vmem>>, vector<1x2xf32>,
    %c4_i32 = arith.constant 4 : i32
    %114 = arith.index_cast %c4_i32 : i32 to index
    %c0_42 = arith.constant 0 : index
    %115 = vector.load %arg6[%114, %c0_42] : memref<8x2xf32, #tpu.memory_space<vmem>>, vector<1x2xf32>
    %cst_43 = arith.constant 0.949999988 : f32
    %116 = vector.broadcast %cst_43 : f32 to vector<1x2xf32>
    %117 = arith.mulf %116, %111 : vector<1x2xf32>
    %cst_44 = arith.constant 5.000000e-02 : f32
    %118 = vector.broadcast %cst_44 : f32 to vector<1x2xf32>
    %119 = arith.mulf %118, %115 : vector<1x2xf32>
    %120 = arith.addf %117, %119 : vector<1x2xf32>
    %cst_45 = arith.constant 5.000000e-01 : f32
    %121 = vector.broadcast %cst_45 : f32 to vector<1x2xf32>
    %122 = arith.mulf %121, %111 : vector<1x2xf32>
    %cst_46 = arith.constant 5.000000e-01 : f32
    %123 = vector.broadcast %cst_46 : f32 to vector<1x2xf32>
    %124 = arith.mulf %123, %115 : vector<1x2xf32>
    %125 = arith.addf %122, %124 : vector<1x2xf32>
    %126 = arith.cmpf ogt, %115, %111 : vector<1x2xf32>
    %127 = arith.select %126, %120, %125 : vector<1x2xi1>, vector<1x2xf32>
    %128 = arith.index_cast %c4_i32 : i32 to index
    %c0_47 = arith.constant 0 : index
    %129 = vector.load %arg6[%128, %c0_47] : memref<8x2xf32, #tpu.memory_space<vmem>>, vector<1x2xf32>
    tpu.vector_store %arg6[%128, %c0_47], %127 {strides = array<i32>} : memref<8x2xf32, #tpu.memory_space<vmem>>, vector<1x2xf32>,
    %c5_i32 = arith.constant 5 : i32
    %130 = arith.index_cast %c5_i32 : i32 to index
    %c0_48 = arith.constant 0 : index
    %131 = vector.load %arg6[%130, %c0_48] : memref<8x2xf32, #tpu.memory_space<vmem>>, vector<1x2xf32>
    %cst_49 = arith.constant 0.949999988 : f32
    %132 = vector.broadcast %cst_49 : f32 to vector<1x2xf32>
    %133 = arith.mulf %132, %127 : vector<1x2xf32>
    %cst_50 = arith.constant 5.000000e-02 : f32
    %134 = vector.broadcast %cst_50 : f32 to vector<1x2xf32>
    %135 = arith.mulf %134, %131 : vector<1x2xf32>
    %136 = arith.addf %133, %135 : vector<1x2xf32>
    %cst_51 = arith.constant 5.000000e-01 : f32
    %137 = vector.broadcast %cst_51 : f32 to vector<1x2xf32>
    %138 = arith.mulf %137, %127 : vector<1x2xf32>
    %cst_52 = arith.constant 5.000000e-01 : f32
    %139 = vector.broadcast %cst_52 : f32 to vector<1x2xf32>
    %140 = arith.mulf %139, %131 : vector<1x2xf32>
    %141 = arith.addf %138, %140 : vector<1x2xf32>
    %142 = arith.cmpf ogt, %131, %127 : vector<1x2xf32>
    %143 = arith.select %142, %136, %141 : vector<1x2xi1>, vector<1x2xf32>
    %144 = arith.index_cast %c5_i32 : i32 to index
    %c0_53 = arith.constant 0 : index
    %145 = vector.load %arg6[%144, %c0_53] : memref<8x2xf32, #tpu.memory_space<vmem>>, vector<1x2xf32>
    tpu.vector_store %arg6[%144, %c0_53], %143 {strides = array<i32>} : memref<8x2xf32, #tpu.memory_space<vmem>>, vector<1x2xf32>,
    %c6_i32 = arith.constant 6 : i32
    %146 = arith.index_cast %c6_i32 : i32 to index
    %c0_54 = arith.constant 0 : index
    %147 = vector.load %arg6[%146, %c0_54] : memref<8x2xf32, #tpu.memory_space<vmem>>, vector<1x2xf32>
    %cst_55 = arith.constant 0.949999988 : f32
    %148 = vector.broadcast %cst_55 : f32 to vector<1x2xf32>
    %149 = arith.mulf %148, %143 : vector<1x2xf32>
    %cst_56 = arith.constant 5.000000e-02 : f32
    %150 = vector.broadcast %cst_56 : f32 to vector<1x2xf32>
    %151 = arith.mulf %150, %147 : vector<1x2xf32>
    %152 = arith.addf %149, %151 : vector<1x2xf32>
    %cst_57 = arith.constant 5.000000e-01 : f32
    %153 = vector.broadcast %cst_57 : f32 to vector<1x2xf32>
    %154 = arith.mulf %153, %143 : vector<1x2xf32>
    %cst_58 = arith.constant 5.000000e-01 : f32
    %155 = vector.broadcast %cst_58 : f32 to vector<1x2xf32>
    %156 = arith.mulf %155, %147 : vector<1x2xf32>
    %157 = arith.addf %154, %156 : vector<1x2xf32>
    %158 = arith.cmpf ogt, %147, %143 : vector<1x2xf32>
    %159 = arith.select %158, %152, %157 : vector<1x2xi1>, vector<1x2xf32>
    %160 = arith.index_cast %c6_i32 : i32 to index
    %c0_59 = arith.constant 0 : index
    %161 = vector.load %arg6[%160, %c0_59] : memref<8x2xf32, #tpu.memory_space<vmem>>, vector<1x2xf32>
    tpu.vector_store %arg6[%160, %c0_59], %159 {strides = array<i32>} : memref<8x2xf32, #tpu.memory_space<vmem>>, vector<1x2xf32>,
    %c7_i32 = arith.constant 7 : i32
    %162 = arith.index_cast %c7_i32 : i32 to index
    %c0_60 = arith.constant 0 : index
    %163 = vector.load %arg6[%162, %c0_60] : memref<8x2xf32, #tpu.memory_space<vmem>>, vector<1x2xf32>
    %cst_61 = arith.constant 0.949999988 : f32
    %164 = vector.broadcast %cst_61 : f32 to vector<1x2xf32>
    %165 = arith.mulf %164, %159 : vector<1x2xf32>
    %cst_62 = arith.constant 5.000000e-02 : f32
    %166 = vector.broadcast %cst_62 : f32 to vector<1x2xf32>
    %167 = arith.mulf %166, %163 : vector<1x2xf32>
    %168 = arith.addf %165, %167 : vector<1x2xf32>
    %cst_63 = arith.constant 5.000000e-01 : f32
    %169 = vector.broadcast %cst_63 : f32 to vector<1x2xf32>
    %170 = arith.mulf %169, %159 : vector<1x2xf32>
    %cst_64 = arith.constant 5.000000e-01 : f32
    %171 = vector.broadcast %cst_64 : f32 to vector<1x2xf32>
    %172 = arith.mulf %171, %163 : vector<1x2xf32>
    %173 = arith.addf %170, %172 : vector<1x2xf32>
    %174 = arith.cmpf ogt, %163, %159 : vector<1x2xf32>
    %175 = arith.select %174, %168, %173 : vector<1x2xi1>, vector<1x2xf32>
    %176 = arith.index_cast %c7_i32 : i32 to index
    %c0_65 = arith.constant 0 : index
    %177 = vector.load %arg6[%176, %c0_65] : memref<8x2xf32, #tpu.memory_space<vmem>>, vector<1x2xf32>
    tpu.vector_store %arg6[%176, %c0_65], %175 {strides = array<i32>} : memref<8x2xf32, #tpu.memory_space<vmem>>, vector<1x2xf32>,
    %c8_i32 = arith.constant 8 : i32
    %c0_66 = arith.constant 0 : index
    %c0_67 = arith.constant 0 : index
    %178 = vector.load %arg6[%c0_66, %c0_67] : memref<8x2xf32, #tpu.memory_space<vmem>>, vector<8x2xf32>
    %179 = tpu.transpose %178, [1, 0] : vector<8x2xf32> -> vector<2x8xf32>
    %180 = vector.extract_strided_slice %12 {offsets = [0, 0, 0], sizes = [1, 1, 8], strides = [1, 1, 1]} : vector<2x1x8xi1> to vector<1x1x8xi1>
    %181 = vector.shape_cast %180 : vector<1x1x8xi1> to vector<1x8xi1>
    %182 = vector.extract_strided_slice %179 {offsets = [0, 0], sizes = [1, 8], strides = [1, 1]} : vector<2x8xf32> to vector<1x8xf32>
    %cst_68 = arith.constant 4.000000e-01 : f32
    %183 = vector.broadcast %cst_68 : f32 to vector<1x8xf32>
    %184 = arith.cmpf ogt, %182, %183 : vector<1x8xf32>
    %cst_69 = arith.constant 2.000000e+00 : f32
    %cst_70 = arith.constant 1.000000e+00 : f32
    %185 = vector.broadcast %cst_69 : f32 to vector<1x8xf32>
    %186 = vector.broadcast %cst_70 : f32 to vector<1x8xf32>
    %187 = arith.select %184, %185, %186 : vector<1x8xi1>, vector<1x8xf32>
    %cst_71 = arith.constant 1.000000e+00 : f32
    %188 = vector.broadcast %cst_71 : f32 to vector<1x8xf32>
    %189 = arith.select %181, %187, %188 : vector<1x8xi1>, vector<1x8xf32>
    %c0_72 = arith.constant 0 : index
    %c0_73 = arith.constant 0 : index
    %c0_74 = arith.constant 0 : index
    %190 = vector.load %arg1[%c0_72, %c0_73, %c0_74] : memref<2x257x8xf32, #tpu.memory_space<vmem>>, vector<1x257x8xf32>
    %191 = vector.shape_cast %190 : vector<1x257x8xf32> to vector<257x8xf32>
    %192 = vector.broadcast %189 : vector<1x8xf32> to vector<257x8xf32>
    %193 = arith.mulf %191, %192 : vector<257x8xf32>
    %194 = tpu.transpose %193, [1, 0] : vector<257x8xf32> -> vector<8x257xf32>
    %c0_75 = arith.constant 0 : index
    %c0_76 = arith.constant 0 : index
    %c0_77 = arith.constant 0 : index
    %195 = vector.load %arg5[%c0_75, %c0_76, %c0_77] : memref<2x8x257xf32, #tpu.memory_space<vmem>>, vector<1x8x257xf32>
    %196 = vector.shape_cast %195 : vector<1x8x257xf32> to vector<8x257xf32>
    %197 = vector.shape_cast %194 : vector<8x257xf32> to vector<1x8x257xf32>
    tpu.vector_store %arg5[%c0_75, %c0_76, %c0_77], %197 {strides = array<i32>} : memref<2x8x257xf32, #tpu.memory_space<vmem>>, vector<1x8x257xf32>,
    %198 = vector.extract_strided_slice %12 {offsets = [1, 0, 0], sizes = [1, 1, 8], strides = [1, 1, 1]} : vector<2x1x8xi1> to vector<1x1x8xi1>
    %199 = vector.shape_cast %198 : vector<1x1x8xi1> to vector<1x8xi1>
    %200 = vector.extract_strided_slice %179 {offsets = [1, 0], sizes = [1, 8], strides = [1, 1]} : vector<2x8xf32> to vector<1x8xf32>
    %cst_78 = arith.constant 4.000000e-01 : f32
    %201 = vector.broadcast %cst_78 : f32 to vector<1x8xf32>
    %202 = arith.cmpf ogt, %200, %201 : vector<1x8xf32>
    %cst_79 = arith.constant 2.000000e+00 : f32
    %cst_80 = arith.constant 1.000000e+00 : f32
    %203 = vector.broadcast %cst_79 : f32 to vector<1x8xf32>
    %204 = vector.broadcast %cst_80 : f32 to vector<1x8xf32>
    %205 = arith.select %202, %203, %204 : vector<1x8xi1>, vector<1x8xf32>
    %cst_81 = arith.constant 1.000000e+00 : f32
    %206 = vector.broadcast %cst_81 : f32 to vector<1x8xf32>
    %207 = arith.select %199, %205, %206 : vector<1x8xi1>, vector<1x8xf32>
    %c1 = arith.constant 1 : index
    %c0_82 = arith.constant 0 : index
    %c0_83 = arith.constant 0 : index
    %208 = vector.load %arg1[%c1, %c0_82, %c0_83] : memref<2x257x8xf32, #tpu.memory_space<vmem>>, vector<1x257x8xf32>
    %209 = vector.shape_cast %208 : vector<1x257x8xf32> to vector<257x8xf32>
    %210 = vector.broadcast %207 : vector<1x8xf32> to vector<257x8xf32>
    %211 = arith.mulf %209, %210 : vector<257x8xf32>
    %212 = tpu.transpose %211, [1, 0] : vector<257x8xf32> -> vector<8x257xf32>
    %c1_84 = arith.constant 1 : index
    %c0_85 = arith.constant 0 : index
    %c0_86 = arith.constant 0 : index
    %213 = vector.load %arg5[%c1_84, %c0_85, %c0_86] : memref<2x8x257xf32, #tpu.memory_space<vmem>>, vector<1x8x257xf32>
    %214 = vector.shape_cast %213 : vector<1x8x257xf32> to vector<8x257xf32>
    %215 = vector.shape_cast %212 : vector<8x257xf32> to vector<1x8x257xf32>
    tpu.vector_store %arg5[%c1_84, %c0_85, %c0_86], %215 {strides = array<i32>} : memref<2x8x257xf32, #tpu.memory_space<vmem>>, vector<1x8x257xf32>,
    return
  }
  func.func @transform_0(%arg0: i32) -> (i32, i32, i32) {
    %c0_i32 = arith.constant 0 : i32
    %c0_i32_0 = arith.constant 0 : i32
    %c0_i32_1 = arith.constant 0 : i32
    return %arg0, %c0_i32, %c0_i32_0 : i32, i32, i32
  }
  func.func @transform_1(%arg0: i32) -> (i32, i32, i32) {
    %c0_i32 = arith.constant 0 : i32
    %c0_i32_0 = arith.constant 0 : i32
    %c0_i32_1 = arith.constant 0 : i32
    return %arg0, %c0_i32, %c0_i32_0 : i32, i32, i32
  }
  func.func @transform_2(%arg0: i32) -> (i32, i32, i32) {
    %c0_i32 = arith.constant 0 : i32
    %c0_i32_0 = arith.constant 0 : i32
    %c0_i32_1 = arith.constant 0 : i32
    return %arg0, %c0_i32, %c0_i32_0 : i32, i32, i32
  }
  func.func @transform_3(%arg0: i32) -> (i32, i32) {
    %c0_i32 = arith.constant 0 : i32
    %c0_i32_0 = arith.constant 0 : i32
    %c0_i32_1 = arith.constant 0 : i32
    return %c0_i32, %c0_i32_0 : i32, i32
  }
  func.func @transform_4(%arg0: i32) -> (i32, i32, i32) {
    %c0_i32 = arith.constant 0 : i32
    %c0_i32_0 = arith.constant 0 : i32
    %c0_i32_1 = arith.constant 0 : i32
    return %arg0, %c0_i32, %c0_i32_0 : i32, i32, i32
  }
}

</mosaic_0001>

<llo_original>
// kernel: weight_loss.1
$region0: #{weight_loss.1}
  #allocation0 [shape = 'u32[]', space=smem, size = 0x4, offset = 0x4, fixed_abs, tag = 'smem constant byte address 0x4 - core index']
  #allocation1 [shape = 'u32[144,128]{1,0:T(1,128)}', space=vmem, size = 0x12000, scoped, tag = 'internal scratch']
  #allocation2 [shape = 'f32[8,2]{1,0:T(8,128)}', space=vmem, size = 0x1000, scoped, tag = 'scratch operand']
  %s0 = inlined_call_operand.vmem [shape: f32[4,257,8], index: 0, kind: input, shape index: {}]
  %s1 = inlined_call_operand.vmem [shape: f32[4,257,8], index: 1, kind: input, shape index: {}]
  %s2 = inlined_call_operand.vmem [shape: f32[4,257,8], index: 2, kind: input, shape index: {}]
  %s3 = inlined_call_operand.vmem [shape: f32[257,37], index: 3, kind: input, shape index: {}]
  %s4 = inlined_call_operand.hbm [shape: f32[4,8,257], index: 4, kind: output, shape index: {}]
  %s5 = sld [smem:[#allocation0]]
  $region49: #{weight_loss.1} parent=0
    _
  %s7 = ssub.s32 1, %s5
  %s8 = scalar_select 0, %s7, %s5
  $region1: #{weight_loss.1} parent=0
    #allocation3 [shape = 'u8[49152]{0}', space=vmem, size = 0xc000, scoped, tag = 'output window, operand 0']
    #allocation4 [shape = 's32[2]{0}', space=sflag, size = 0x8, scoped, tag = 'scoped memory for weight_loss.1']
    %9 = vsyncpa [#allocation4], 0
    %s10 = scalar_lea.sflag [#allocation4], 1
    %11 = vsyncpa %s10, 0
    loop: start=0, step=1, limit=4
    $region2: #{weight_loss.1} parent=1 // loop_pre_header
      _
    $region3: #{weight_loss.1} parent=1 // loop_header
      %s13 = sphi 0, %s17
      %p14 = scmp.ge.s32.totalorder %s13, 4
      %s23 = sphi 0, %s25
      %s26 = sphi 0, %s23
      %s27 = sphi 0, %s26
      %s43 = sphi 0, %s27
      %s49 = sphi 0, %s51
      %s52 = sphi 0, %s49
      %s53 = sphi 0, %s52
      %s69 = sphi 0, %s53
      %s75 = sphi 0, %s77
      %s78 = sphi 0, %s75
      %s79 = sphi 0, %s78
      %s95 = sphi 0, %s79
      %s99 = sphi 0, %s99
      %s101 = sphi 0, %s99
      %s102 = sphi 0, %s101
      %s116 = sphi 0, %s102
      %s122 = sphi 0, %s124
      %s125 = sphi 0, %s122
      %s126 = sphi 0, %s125
      %s142 = sphi 0, %s126
    $region4: #{weight_loss.1} parent=1 // loop_header_branch
      %16 = sbr.rel (%p14) target = $region8
    $region5: #{weight_loss.1} parent=1 // loop_body
      %s18 = ssub.s32 %s13, 1
      %s19 = ssub.s32 %s13, 2
      %s20 = sadd.s32 %s13, 1
      %s21 = ssub.s32 %s13, %s20
      %p22 = scmp.eq.s32.totalorder %s21, 0
      %s24 = sadd.s32 %s23, 1
      %s25 = scalar_select %p22, %s23, %s24
      %p28 = pneg %p22
      %p29 = scmp.eq.s32.totalorder %s13, 1
      %p30 = por %p28, %p29
      %p31 = scmp.ne.s32.totalorder %s23, %s26
      %p32 = scmp.eq.s32.totalorder %s13, 0
      %p33 = por %p31, %p32
      %p34 = scmp.ne.s32.totalorder %s23, %s26
      %p35 = scmp.eq.s32.totalorder %s18, 1
      %p36 = por %p34, %p35
      %p37 = scmp.ne.s32.totalorder %s26, %s27
      %p38 = scmp.eq.s32.totalorder %s18, 0
      %p39 = por %p37, %p38
      %p40 = scmp.ne.s32.totalorder %s26, %s27
      %p41 = scmp.eq.s32.totalorder %s19, 1
      %p42 = por %p40, %p41
      %p44 = scmp.ne.s32.totalorder %s27, %s43
      %p45 = scmp.eq.s32.totalorder %s19, 0
      %p46 = por %p44, %p45
      %s47 = ssub.s32 %s13, %s20
      %p48 = scmp.eq.s32.totalorder %s47, 0
      %s50 = sadd.s32 %s49, 1
      %s51 = scalar_select %p48, %s49, %s50
      %p54 = pneg %p48
      %p55 = scmp.eq.s32.totalorder %s13, 1
      %p56 = por %p54, %p55
      %p57 = scmp.ne.s32.totalorder %s49, %s52
      %p58 = scmp.eq.s32.totalorder %s13, 0
      %p59 = por %p57, %p58
      %p60 = scmp.ne.s32.totalorder %s49, %s52
      %p61 = scmp.eq.s32.totalorder %s18, 1
      %p62 = por %p60, %p61
      %p63 = scmp.ne.s32.totalorder %s52, %s53
      %p64 = scmp.eq.s32.totalorder %s18, 0
      %p65 = por %p63, %p64
      %p66 = scmp.ne.s32.totalorder %s52, %s53
      %p67 = scmp.eq.s32.totalorder %s19, 1
      %p68 = por %p66, %p67
      %p70 = scmp.ne.s32.totalorder %s53, %s69
      %p71 = scmp.eq.s32.totalorder %s19, 0
      %p72 = por %p70, %p71
      %s73 = ssub.s32 %s13, %s20
      %p74 = scmp.eq.s32.totalorder %s73, 0
      %s76 = sadd.s32 %s75, 1
      %s77 = scalar_select %p74, %s75, %s76
      %p80 = pneg %p74
      %p81 = scmp.eq.s32.totalorder %s13, 1
      %p82 = por %p80, %p81
      %p83 = scmp.ne.s32.totalorder %s75, %s78
      %p84 = scmp.eq.s32.totalorder %s13, 0
      %p85 = por %p83, %p84
      %p86 = scmp.ne.s32.totalorder %s75, %s78
      %p87 = scmp.eq.s32.totalorder %s18, 1
      %p88 = por %p86, %p87
      %p89 = scmp.ne.s32.totalorder %s78, %s79
      %p90 = scmp.eq.s32.totalorder %s18, 0
      %p91 = por %p89, %p90
      %p92 = scmp.ne.s32.totalorder %s78, %s79
      %p93 = scmp.eq.s32.totalorder %s19, 1
      %p94 = por %p92, %p93
      %p96 = scmp.ne.s32.totalorder %s79, %s95
      %p97 = scmp.eq.s32.totalorder %s19, 0
      %p98 = por %p96, %p97
      %s100 = sadd.s32 %s99, 1
      %p103 = scmp.eq.s32.totalorder %s13, 1
      %p104 = scmp.ne.s32.totalorder %s99, %s101
      %p105 = scmp.eq.s32.totalorder %s13, 0
      %p106 = por %p104, %p105
      %p107 = scmp.ne.s32.totalorder %s99, %s101
      %p108 = scmp.eq.s32.totalorder %s18, 1
      %p109 = por %p107, %p108
      %p110 = scmp.ne.s32.totalorder %s101, %s102
      %p111 = scmp.eq.s32.totalorder %s18, 0
      %p112 = por %p110, %p111
      %p113 = scmp.ne.s32.totalorder %s101, %s102
      %p114 = scmp.eq.s32.totalorder %s19, 1
      %p115 = por %p113, %p114
      %p117 = scmp.ne.s32.totalorder %s102, %s116
      %p118 = scmp.eq.s32.totalorder %s19, 0
      %p119 = por %p117, %p118
      %s120 = ssub.s32 %s13, %s20
      %p121 = scmp.eq.s32.totalorder %s120, 0
      %s123 = sadd.s32 %s122, 1
      %s124 = scalar_select %p121, %s122, %s123
      %p127 = pneg %p121
      %p128 = scmp.eq.s32.totalorder %s13, 1
      %p129 = por %p127, %p128
      %p130 = scmp.ne.s32.totalorder %s122, %s125
      %p131 = scmp.eq.s32.totalorder %s13, 0
      %p132 = por %p130, %p131
      %p133 = scmp.ne.s32.totalorder %s122, %s125
      %p134 = scmp.eq.s32.totalorder %s18, 1
      %p135 = por %p133, %p134
      %p136 = scmp.ne.s32.totalorder %s125, %s126
      %p137 = scmp.eq.s32.totalorder %s18, 0
      %p138 = por %p136, %p137
      %p139 = scmp.ne.s32.totalorder %s125, %s126
      %p140 = scmp.eq.s32.totalorder %s19, 1
      %p141 = por %p139, %p140
      %p143 = scmp.ne.s32.totalorder %s126, %s142
      %p144 = scmp.eq.s32.totalorder %s19, 0
      %p145 = por %p143, %p144
      %p146 = scmp.le.s32.totalorder 1, %s13
      %p147 = scmp.lt.s32.totalorder %s13, 3
      %p148 = pnand %p146, %p147
      %p149 = pneg %p148
      // Predicated region
      $region9: #{weight_loss.1} parent=5 // pred_check
        _
      $region10: #{weight_loss.1} parent=5 // pred_check_branch
        %151 = sbr.rel (%p148) target = $region12
      $region11: #{weight_loss.1} parent=5 // pred_region
        %s152 = ssub.s32 %s13, 1
        // Predicated region
        $region13: #{weight_loss.1} parent=11 // pred_check
          %p153 = pneg %p112
        $region14: #{weight_loss.1} parent=11 // pred_check_branch
          %155 = sbr.rel (%p153) target = $region16
        $region15: #{weight_loss.1} parent=11 // pred_region
          _
        $region16: #{weight_loss.1} parent=11 // pred_fallthru
          _
      $region12: #{weight_loss.1} parent=5 // pred_fallthru
        _
      %p156 = scmp.lt.s32.totalorder %s13, 2
      // Predicated region
      $region17: #{weight_loss.1} parent=5 // pred_check
        %p157 = pneg %p156
      $region18: #{weight_loss.1} parent=5 // pred_check_branch
        %159 = sbr.rel (%p157) target = $region20
      $region19: #{weight_loss.1} parent=5 // pred_region
        // Predicated region
        $region21: #{weight_loss.1} parent=19 // pred_check
          %p160 = pneg %p33
        $region22: #{weight_loss.1} parent=19 // pred_check_branch
          %162 = sbr.rel (%p160) target = $region24
        $region23: #{weight_loss.1} parent=19 // pred_region
          %s163 = smul.u32 2, %s13
          %p164 = scmp.lt.s32.totalorder %s163, 3
          %s165 = scalar_select %p164, %s163, 3
          %s166 = smul.addr %s165, 33
          %s167 = smul.addr %s166, 8
          %s168 = scalar_lea.vmem %s0, %s167
          %s169 = smul.u32 2, %s13
        $region24: #{weight_loss.1} parent=19 // pred_fallthru
          _
        // Predicated region
        $region25: #{weight_loss.1} parent=19 // pred_check
          %p170 = pneg %p59
        $region26: #{weight_loss.1} parent=19 // pred_check_branch
          %172 = sbr.rel (%p170) target = $region28
        $region27: #{weight_loss.1} parent=19 // pred_region
          %s173 = smul.u32 2, %s13
          %p174 = scmp.lt.s32.totalorder %s173, 3
          %s175 = scalar_select %p174, %s173, 3
          %s176 = smul.addr %s175, 33
          %s177 = smul.addr %s176, 8
          %s178 = scalar_lea.vmem %s1, %s177
          %s179 = smul.u32 2, %s13
        $region28: #{weight_loss.1} parent=19 // pred_fallthru
          _
        // Predicated region
        $region29: #{weight_loss.1} parent=19 // pred_check
          %p180 = pneg %p85
        $region30: #{weight_loss.1} parent=19 // pred_check_branch
          %182 = sbr.rel (%p180) target = $region32
        $region31: #{weight_loss.1} parent=19 // pred_region
          %s183 = smul.u32 2, %s13
          %p184 = scmp.lt.s32.totalorder %s183, 3
          %s185 = scalar_select %p184, %s183, 3
          %s186 = smul.addr %s185, 33
          %s187 = smul.addr %s186, 8
          %s188 = scalar_lea.vmem %s2, %s187
          %s189 = smul.u32 2, %s13
        $region32: #{weight_loss.1} parent=19 // pred_fallthru
          _
      $region20: #{weight_loss.1} parent=5 // pred_fallthru
        _
      %p190 = scmp.le.s32.totalorder 1, %s13
      %p191 = scmp.lt.s32.totalorder %s13, 3
      %p192 = pnand %p190, %p191
      %p193 = pneg %p192
      // Predicated region
      $region33: #{weight_loss.1} parent=5 // pred_check
        _
      $region34: #{weight_loss.1} parent=5 // pred_check_branch
        %195 = sbr.rel (%p192) target = $region36
      $region35: #{weight_loss.1} parent=5 // pred_region
        %s196 = ssub.s32 %s13, 1
        %s197 = smul.u32 2, %s18
        %p198 = scmp.lt.s32.totalorder %s197, 3
        %s199 = scalar_select %p198, %s197, 3
        %s200 = smul.addr %s199, 33
        %s201 = smul.addr %s200, 8
        %s202 = scalar_lea.vmem %s0, %s201
        %p203 = pneg %p39
        %p204 = pneg %p36
        %s205 = smul.u32 2, %s18
        %p206 = scmp.lt.s32.totalorder %s205, 3
        %s207 = scalar_select %p206, %s205, 3
        %s208 = smul.addr %s207, 33
        %s209 = smul.addr %s208, 8
        %s210 = scalar_lea.vmem %s1, %s209
        %p211 = pneg %p65
        %p212 = pneg %p62
        %s213 = smul.u32 2, %s18
        %p214 = scmp.lt.s32.totalorder %s213, 3
        %s215 = scalar_select %p214, %s213, 3
        %s216 = smul.addr %s215, 33
        %s217 = smul.addr %s216, 8
        %s218 = scalar_lea.vmem %s2, %s217
        %p219 = pneg %p91
        %p220 = pneg %p88
        %p221 = pneg %p112
        %p222 = pneg %p109
        %p223 = pneg %p138
        %p224 = pneg %p135
        %s225 = sand.u32 %s125, 1
        %s226 = scalar_lea.sflag [#allocation4], %s225
        %s227 = sand.u32 %s125, 1
        %s228 = smul.addr %s227, 48
        %s229 = scalar_lea.vmem [#allocation3], %s228
        %s230 = smul.u32 2, %s18
        %p231 = scmp.lt.s32.totalorder %s230, 3
        %s232 = scalar_select %p231, %s230, 3
        %s233 = smul.addr %s232, 33
        %s234 = smul.addr %s233, 8
        %s235 = scalar_lea.vmem %s0, %s234
        %s236 = smul.u32 2, %s18
        %s237 = smul.u32 2, %s18
        %p238 = scmp.lt.s32.totalorder %s237, 3
        %s239 = scalar_select %p238, %s237, 3
        %s240 = smul.addr %s239, 33
        %s241 = smul.addr %s240, 8
        %s242 = scalar_lea.vmem %s1, %s241
        %s243 = smul.u32 2, %s18
        %s244 = smul.u32 2, %s18
        %p245 = scmp.lt.s32.totalorder %s244, 3
        %s246 = scalar_select %p245, %s244, 3
        %s247 = smul.addr %s246, 33
        %s248 = smul.addr %s247, 8
        %s249 = scalar_lea.vmem %s2, %s248
        %s250 = smul.u32 2, %s18
        %s251 = smul.u32 2, %s18
        %v252 = vld [vmem:[%s3] sm:$0xff]
        %v253 = vld [vmem:[%s3 + $0x8] sm:$0xff]
        %v254 = vld [vmem:[%s3 + $0x10] sm:$0xff]
        %v255 = vld [vmem:[%s3 + $0x18] sm:$0xff]
        %v256 = vld [vmem:[%s3 + $0x20] sm:$0xff]
        %v257 = vld [vmem:[%s3 + $0x28] sm:$0xff]
        %v258 = vld [vmem:[%s3 + $0x30] sm:$0xff]
        %v259 = vld [vmem:[%s3 + $0x38] sm:$0xff]
        %v260 = vld [vmem:[%s3 + $0x40] sm:$0xff]
        %v261 = vld [vmem:[%s3 + $0x48] sm:$0xff]
        %v262 = vld [vmem:[%s3 + $0x50] sm:$0xff]
        %v263 = vld [vmem:[%s3 + $0x58] sm:$0xff]
        %v264 = vld [vmem:[%s3 + $0x60] sm:$0xff]
        %v265 = vld [vmem:[%s3 + $0x68] sm:$0xff]
        %v266 = vld [vmem:[%s3 + $0x70] sm:$0xff]
        %v267 = vld [vmem:[%s3 + $0x78] sm:$0xff]
        %v268 = vld [vmem:[%s3 + $0x80] sm:$0xff]
        %v269 = vld [vmem:[%s3 + $0x88] sm:$0xff]
        %v270 = vld [vmem:[%s3 + $0x90] sm:$0xff]
        %v271 = vld [vmem:[%s3 + $0x98] sm:$0xff]
        %v272 = vld [vmem:[%s3 + $0xa0] sm:$0xff]
        %v273 = vld [vmem:[%s3 + $0xa8] sm:$0xff]
        %v274 = vld [vmem:[%s3 + $0xb0] sm:$0xff]
        %v275 = vld [vmem:[%s3 + $0xb8] sm:$0xff]
        %v276 = vld [vmem:[%s3 + $0xc0] sm:$0xff]
        %v277 = vld [vmem:[%s3 + $0xc8] sm:$0xff]
        %v278 = vld [vmem:[%s3 + $0xd0] sm:$0xff]
        %v279 = vld [vmem:[%s3 + $0xd8] sm:$0xff]
        %v280 = vld [vmem:[%s3 + $0xe0] sm:$0xff]
        %v281 = vld [vmem:[%s3 + $0xe8] sm:$0xff]
        %v282 = vld [vmem:[%s3 + $0xf0] sm:$0xff]
        %v283 = vld [vmem:[%s3 + $0xf8] sm:$0xff]
        %v284 = vld [vmem:[%s3 + $0x100] sm:$0x1]
        %v285 = vld [vmem:[%s242] sm:$0xff]
        %v286 = vld [vmem:[%s242 + $0x8] sm:$0xff]
        %v287 = vld [vmem:[%s242 + $0x10] sm:$0xff]
        %v288 = vld [vmem:[%s242 + $0x18] sm:$0xff]
        %v289 = vld [vmem:[%s242 + $0x20] sm:$0xff]
        %v290 = vld [vmem:[%s242 + $0x28] sm:$0xff]
        %v291 = vld [vmem:[%s242 + $0x30] sm:$0xff]
        %v292 = vld [vmem:[%s242 + $0x38] sm:$0xff]
        %v293 = vld [vmem:[%s242 + $0x40] sm:$0xff]
        %v294 = vld [vmem:[%s242 + $0x48] sm:$0xff]
        %v295 = vld [vmem:[%s242 + $0x50] sm:$0xff]
        %v296 = vld [vmem:[%s242 + $0x58] sm:$0xff]
        %v297 = vld [vmem:[%s242 + $0x60] sm:$0xff]
        %v298 = vld [vmem:[%s242 + $0x68] sm:$0xff]
        %v299 = vld [vmem:[%s242 + $0x70] sm:$0xff]
        %v300 = vld [vmem:[%s242 + $0x78] sm:$0xff]
        %v301 = vld [vmem:[%s242 + $0x80] sm:$0xff]
        %v302 = vld [vmem:[%s242 + $0x88] sm:$0xff]
        %v303 = vld [vmem:[%s242 + $0x90] sm:$0xff]
        %v304 = vld [vmem:[%s242 + $0x98] sm:$0xff]
        %v305 = vld [vmem:[%s242 + $0xa0] sm:$0xff]
        %v306 = vld [vmem:[%s242 + $0xa8] sm:$0xff]
        %v307 = vld [vmem:[%s242 + $0xb0] sm:$0xff]
        %v308 = vld [vmem:[%s242 + $0xb8] sm:$0xff]
        %v309 = vld [vmem:[%s242 + $0xc0] sm:$0xff]
        %v310 = vld [vmem:[%s242 + $0xc8] sm:$0xff]
        %v311 = vld [vmem:[%s242 + $0xd0] sm:$0xff]
        %v312 = vld [vmem:[%s242 + $0xd8] sm:$0xff]
        %v313 = vld [vmem:[%s242 + $0xe0] sm:$0xff]
        %v314 = vld [vmem:[%s242 + $0xe8] sm:$0xff]
        %v315 = vld [vmem:[%s242 + $0xf0] sm:$0xff]
        %v316 = vld [vmem:[%s242 + $0xf8] sm:$0xff]
        %v317 = vld [vmem:[%s242 + $0x100] sm:$0x1]
        %v318 = vld [vmem:[%s242 + $0x108] sm:$0xff]
        %v319 = vld [vmem:[%s242 + $0x110] sm:$0xff]
        %v320 = vld [vmem:[%s242 + $0x118] sm:$0xff]
        %v321 = vld [vmem:[%s242 + $0x120] sm:$0xff]
        %v322 = vld [vmem:[%s242 + $0x128] sm:$0xff]
        %v323 = vld [vmem:[%s242 + $0x130] sm:$0xff]
        %v324 = vld [vmem:[%s242 + $0x138] sm:$0xff]
        %v325 = vld [vmem:[%s242 + $0x140] sm:$0xff]
        %v326 = vld [vmem:[%s242 + $0x148] sm:$0xff]
        %v327 = vld [vmem:[%s242 + $0x150] sm:$0xff]
        %v328 = vld [vmem:[%s242 + $0x158] sm:$0xff]
        %v329 = vld [vmem:[%s242 + $0x160] sm:$0xff]
        %v330 = vld [vmem:[%s242 + $0x168] sm:$0xff]
        %v331 = vld [vmem:[%s242 + $0x170] sm:$0xff]
        %v332 = vld [vmem:[%s242 + $0x178] sm:$0xff]
        %v333 = vld [vmem:[%s242 + $0x180] sm:$0xff]
        %v334 = vld [vmem:[%s242 + $0x188] sm:$0xff]
        %v335 = vld [vmem:[%s242 + $0x190] sm:$0xff]
        %v336 = vld [vmem:[%s242 + $0x198] sm:$0xff]
        %v337 = vld [vmem:[%s242 + $0x1a0] sm:$0xff]
        %v338 = vld [vmem:[%s242 + $0x1a8] sm:$0xff]
        %v339 = vld [vmem:[%s242 + $0x1b0] sm:$0xff]
        %v340 = vld [vmem:[%s242 + $0x1b8] sm:$0xff]
        %v341 = vld [vmem:[%s242 + $0x1c0] sm:$0xff]
        %v342 = vld [vmem:[%s242 + $0x1c8] sm:$0xff]
        %v343 = vld [vmem:[%s242 + $0x1d0] sm:$0xff]
        %v344 = vld [vmem:[%s242 + $0x1d8] sm:$0xff]
        %v345 = vld [vmem:[%s242 + $0x1e0] sm:$0xff]
        %v346 = vld [vmem:[%s242 + $0x1e8] sm:$0xff]
        %v347 = vld [vmem:[%s242 + $0x1f0] sm:$0xff]
        %v348 = vld [vmem:[%s242 + $0x1f8] sm:$0xff]
        %v349 = vld [vmem:[%s242 + $0x200] sm:$0xff]
        %v350 = vld [vmem:[%s242 + $0x208] sm:$0x1]
        %v351 = vld [vmem:[%s249] sm:$0xff]
        %v352 = vld [vmem:[%s249 + $0x8] sm:$0xff]
        %v353 = vld [vmem:[%s249 + $0x10] sm:$0xff]
        %v354 = vld [vmem:[%s249 + $0x18] sm:$0xff]
        %v355 = vld [vmem:[%s249 + $0x20] sm:$0xff]
        %v356 = vld [vmem:[%s249 + $0x28] sm:$0xff]
        %v357 = vld [vmem:[%s249 + $0x30] sm:$0xff]
        %v358 = vld [vmem:[%s249 + $0x38] sm:$0xff]
        %v359 = vld [vmem:[%s249 + $0x40] sm:$0xff]
        %v360 = vld [vmem:[%s249 + $0x48] sm:$0xff]
        %v361 = vld [vmem:[%s249 + $0x50] sm:$0xff]
        %v362 = vld [vmem:[%s249 + $0x58] sm:$0xff]
        %v363 = vld [vmem:[%s249 + $0x60] sm:$0xff]
        %v364 = vld [vmem:[%s249 + $0x68] sm:$0xff]
        %v365 = vld [vmem:[%s249 + $0x70] sm:$0xff]
        %v366 = vld [vmem:[%s249 + $0x78] sm:$0xff]
        %v367 = vld [vmem:[%s249 + $0x80] sm:$0xff]
        %v368 = vld [vmem:[%s249 + $0x88] sm:$0xff]
        %v369 = vld [vmem:[%s249 + $0x90] sm:$0xff]
        %v370 = vld [vmem:[%s249 + $0x98] sm:$0xff]
        %v371 = vld [vmem:[%s249 + $0xa0] sm:$0xff]
        %v372 = vld [vmem:[%s249 + $0xa8] sm:$0xff]
        %v373 = vld [vmem:[%s249 + $0xb0] sm:$0xff]
        %v374 = vld [vmem:[%s249 + $0xb8] sm:$0xff]
        %v375 = vld [vmem:[%s249 + $0xc0] sm:$0xff]
        %v376 = vld [vmem:[%s249 + $0xc8] sm:$0xff]
        %v377 = vld [vmem:[%s249 + $0xd0] sm:$0xff]
        %v378 = vld [vmem:[%s249 + $0xd8] sm:$0xff]
        %v379 = vld [vmem:[%s249 + $0xe0] sm:$0xff]
        %v380 = vld [vmem:[%s249 + $0xe8] sm:$0xff]
        %v381 = vld [vmem:[%s249 + $0xf0] sm:$0xff]
        %v382 = vld [vmem:[%s249 + $0xf8] sm:$0xff]
        %v383 = vld [vmem:[%s249 + $0x100] sm:$0x1]
        %v384 = vld [vmem:[%s249 + $0x108] sm:$0xff]
        %v385 = vld [vmem:[%s249 + $0x110] sm:$0xff]
        %v386 = vld [vmem:[%s249 + $0x118] sm:$0xff]
        %v387 = vld [vmem:[%s249 + $0x120] sm:$0xff]
        %v388 = vld [vmem:[%s249 + $0x128] sm:$0xff]
        %v389 = vld [vmem:[%s249 + $0x130] sm:$0xff]
        %v390 = vld [vmem:[%s249 + $0x138] sm:$0xff]
        %v391 = vld [vmem:[%s249 + $0x140] sm:$0xff]
        %v392 = vld [vmem:[%s249 + $0x148] sm:$0xff]
        %v393 = vld [vmem:[%s249 + $0x150] sm:$0xff]
        %v394 = vld [vmem:[%s249 + $0x158] sm:$0xff]
        %v395 = vld [vmem:[%s249 + $0x160] sm:$0xff]
        %v396 = vld [vmem:[%s249 + $0x168] sm:$0xff]
        %v397 = vld [vmem:[%s249 + $0x170] sm:$0xff]
        %v398 = vld [vmem:[%s249 + $0x178] sm:$0xff]
        %v399 = vld [vmem:[%s249 + $0x180] sm:$0xff]
        %v400 = vld [vmem:[%s249 + $0x188] sm:$0xff]
        %v401 = vld [vmem:[%s249 + $0x190] sm:$0xff]
        %v402 = vld [vmem:[%s249 + $0x198] sm:$0xff]
        %v403 = vld [vmem:[%s249 + $0x1a0] sm:$0xff]
        %v404 = vld [vmem:[%s249 + $0x1a8] sm:$0xff]
        %v405 = vld [vmem:[%s249 + $0x1b0] sm:$0xff]
        %v406 = vld [vmem:[%s249 + $0x1b8] sm:$0xff]
        %v407 = vld [vmem:[%s249 + $0x1c0] sm:$0xff]
        %v408 = vld [vmem:[%s249 + $0x1c8] sm:$0xff]
        %v409 = vld [vmem:[%s249 + $0x1d0] sm:$0xff]
        %v410 = vld [vmem:[%s249 + $0x1d8] sm:$0xff]
        %v411 = vld [vmem:[%s249 + $0x1e0] sm:$0xff]
        %v412 = vld [vmem:[%s249 + $0x1e8] sm:$0xff]
        %v413 = vld [vmem:[%s249 + $0x1f0] sm:$0xff]
        %v414 = vld [vmem:[%s249 + $0x1f8] sm:$0xff]
        %v415 = vld [vmem:[%s249 + $0x200] sm:$0xff]
        %v416 = vld [vmem:[%s249 + $0x208] sm:$0x1]
        %v417 = vmul.f32 %v285, %v285
        %v418 = vmul.f32 %v286, %v286
        %v419 = vmul.f32 %v287, %v287
        %v420 = vmul.f32 %v288, %v288
        %v421 = vmul.f32 %v289, %v289
        %v422 = vmul.f32 %v290, %v290
        %v423 = vmul.f32 %v291, %v291
        %v424 = vmul.f32 %v292, %v292
        %v425 = vmul.f32 %v293, %v293
        %v426 = vmul.f32 %v294, %v294
        %v427 = vmul.f32 %v295, %v295
        %v428 = vmul.f32 %v296, %v296
        %v429 = vmul.f32 %v297, %v297
        %v430 = vmul.f32 %v298, %v298
        %v431 = vmul.f32 %v299, %v299
        %v432 = vmul.f32 %v300, %v300
        %v433 = vmul.f32 %v301, %v301
        %v434 = vmul.f32 %v302, %v302
        %v435 = vmul.f32 %v303, %v303
        %v436 = vmul.f32 %v304, %v304
        %v437 = vmul.f32 %v305, %v305
        %v438 = vmul.f32 %v306, %v306
        %v439 = vmul.f32 %v307, %v307
        %v440 = vmul.f32 %v308, %v308
        %v441 = vmul.f32 %v309, %v309
        %v442 = vmul.f32 %v310, %v310
        %v443 = vmul.f32 %v311, %v311
        %v444 = vmul.f32 %v312, %v312
        %v445 = vmul.f32 %v313, %v313
        %v446 = vmul.f32 %v314, %v314
        %v447 = vmul.f32 %v315, %v315
        %v448 = vmul.f32 %v316, %v316
        %v449 = vmul.f32 %v317, %v317
        %v450 = vmul.f32 %v318, %v318
        %v451 = vmul.f32 %v319, %v319
        %v452 = vmul.f32 %v320, %v320
        %v453 = vmul.f32 %v321, %v321
        %v454 = vmul.f32 %v322, %v322
        %v455 = vmul.f32 %v323, %v323
        %v456 = vmul.f32 %v324, %v324
        %v457 = vmul.f32 %v325, %v325
        %v458 = vmul.f32 %v326, %v326
        %v459 = vmul.f32 %v327, %v327
        %v460 = vmul.f32 %v328, %v328
        %v461 = vmul.f32 %v329, %v329
        %v462 = vmul.f32 %v330, %v330
        %v463 = vmul.f32 %v331, %v331
        %v464 = vmul.f32 %v332, %v332
        %v465 = vmul.f32 %v333, %v333
        %v466 = vmul.f32 %v334, %v334
        %v467 = vmul.f32 %v335, %v335
        %v468 = vmul.f32 %v336, %v336
        %v469 = vmul.f32 %v337, %v337
        %v470 = vmul.f32 %v338, %v338
        %v471 = vmul.f32 %v339, %v339
        %v472 = vmul.f32 %v340, %v340
        %v473 = vmul.f32 %v341, %v341
        %v474 = vmul.f32 %v342, %v342
        %v475 = vmul.f32 %v343, %v343
        %v476 = vmul.f32 %v344, %v344
        %v477 = vmul.f32 %v345, %v345
        %v478 = vmul.f32 %v346, %v346
        %v479 = vmul.f32 %v347, %v347
        %v480 = vmul.f32 %v348, %v348
        %v481 = vmul.f32 %v349, %v349
        %v482 = vmul.f32 %v350, %v350
        %v483 = vmul.f32 %v351, %v351
        %v484 = vmul.f32 %v352, %v352
        %v485 = vmul.f32 %v353, %v353
        %v486 = vmul.f32 %v354, %v354
        %v487 = vmul.f32 %v355, %v355
        %v488 = vmul.f32 %v356, %v356
        %v489 = vmul.f32 %v357, %v357
        %v490 = vmul.f32 %v358, %v358
        %v491 = vmul.f32 %v359, %v359
        %v492 = vmul.f32 %v360, %v360
        %v493 = vmul.f32 %v361, %v361
        %v494 = vmul.f32 %v362, %v362
        %v495 = vmul.f32 %v363, %v363
        %v496 = vmul.f32 %v364, %v364
        %v497 = vmul.f32 %v365, %v365
        %v498 = vmul.f32 %v366, %v366
        %v499 = vmul.f32 %v367, %v367
        %v500 = vmul.f32 %v368, %v368
        %v501 = vmul.f32 %v369, %v369
        %v502 = vmul.f32 %v370, %v370
        %v503 = vmul.f32 %v371, %v371
        %v504 = vmul.f32 %v372, %v372
        %v505 = vmul.f32 %v373, %v373
        %v506 = vmul.f32 %v374, %v374
        %v507 = vmul.f32 %v375, %v375
        %v508 = vmul.f32 %v376, %v376
        %v509 = vmul.f32 %v377, %v377
        %v510 = vmul.f32 %v378, %v378
        %v511 = vmul.f32 %v379, %v379
        %v512 = vmul.f32 %v380, %v380
        %v513 = vmul.f32 %v381, %v381
        %v514 = vmul.f32 %v382, %v382
        %v515 = vmul.f32 %v383, %v383
        %v516 = vmul.f32 %v384, %v384
        %v517 = vmul.f32 %v385, %v385
        %v518 = vmul.f32 %v386, %v386
        %v519 = vmul.f32 %v387, %v387
        %v520 = vmul.f32 %v388, %v388
        %v521 = vmul.f32 %v389, %v389
        %v522 = vmul.f32 %v390, %v390
        %v523 = vmul.f32 %v391, %v391
        %v524 = vmul.f32 %v392, %v392
        %v525 = vmul.f32 %v393, %v393
        %v526 = vmul.f32 %v394, %v394
        %v527 = vmul.f32 %v395, %v395
        %v528 = vmul.f32 %v396, %v396
        %v529 = vmul.f32 %v397, %v397
        %v530 = vmul.f32 %v398, %v398
        %v531 = vmul.f32 %v399, %v399
        %v532 = vmul.f32 %v400, %v400
        %v533 = vmul.f32 %v401, %v401
        %v534 = vmul.f32 %v402, %v402
        %v535 = vmul.f32 %v403, %v403
        %v536 = vmul.f32 %v404, %v404
        %v537 = vmul.f32 %v405, %v405
        %v538 = vmul.f32 %v406, %v406
        %v539 = vmul.f32 %v407, %v407
        %v540 = vmul.f32 %v408, %v408
        %v541 = vmul.f32 %v409, %v409
        %v542 = vmul.f32 %v410, %v410
        %v543 = vmul.f32 %v411, %v411
        %v544 = vmul.f32 %v412, %v412
        %v545 = vmul.f32 %v413, %v413
        %v546 = vmul.f32 %v414, %v414
        %v547 = vmul.f32 %v415, %v415
        %v548 = vmul.f32 %v416, %v416
        %v549 = vadd.f32 %v417, %v483
        %v550 = vadd.f32 %v418, %v484
        %v551 = vadd.f32 %v419, %v485
        %v552 = vadd.f32 %v420, %v486
        %v553 = vadd.f32 %v421, %v487
        %v554 = vadd.f32 %v422, %v488
        %v555 = vadd.f32 %v423, %v489
        %v556 = vadd.f32 %v424, %v490
        %v557 = vadd.f32 %v425, %v491
        %v558 = vadd.f32 %v426, %v492
        %v559 = vadd.f32 %v427, %v493
        %v560 = vadd.f32 %v428, %v494
        %v561 = vadd.f32 %v429, %v495
        %v562 = vadd.f32 %v430, %v496
        %v563 = vadd.f32 %v431, %v497
        %v564 = vadd.f32 %v432, %v498
        %v565 = vadd.f32 %v433, %v499
        %v566 = vadd.f32 %v434, %v500
        %v567 = vadd.f32 %v435, %v501
        %v568 = vadd.f32 %v436, %v502
        %v569 = vadd.f32 %v437, %v503
        %v570 = vadd.f32 %v438, %v504
        %v571 = vadd.f32 %v439, %v505
        %v572 = vadd.f32 %v440, %v506
        %v573 = vadd.f32 %v441, %v507
        %v574 = vadd.f32 %v442, %v508
        %v575 = vadd.f32 %v443, %v509
        %v576 = vadd.f32 %v444, %v510
        %v577 = vadd.f32 %v445, %v511
        %v578 = vadd.f32 %v446, %v512
        %v579 = vadd.f32 %v447, %v513
        %v580 = vadd.f32 %v448, %v514
        %v581 = vadd.f32 %v449, %v515
        %v582 = vadd.f32 %v450, %v516
        %v583 = vadd.f32 %v451, %v517
        %v584 = vadd.f32 %v452, %v518
        %v585 = vadd.f32 %v453, %v519
        %v586 = vadd.f32 %v454, %v520
        %v587 = vadd.f32 %v455, %v521
        %v588 = vadd.f32 %v456, %v522
        %v589 = vadd.f32 %v457, %v523
        %v590 = vadd.f32 %v458, %v524
        %v591 = vadd.f32 %v459, %v525
        %v592 = vadd.f32 %v460, %v526
        %v593 = vadd.f32 %v461, %v527
        %v594 = vadd.f32 %v462, %v528
        %v595 = vadd.f32 %v463, %v529
        %v596 = vadd.f32 %v464, %v530
        %v597 = vadd.f32 %v465, %v531
        %v598 = vadd.f32 %v466, %v532
        %v599 = vadd.f32 %v467, %v533
        %v600 = vadd.f32 %v468, %v534
        %v601 = vadd.f32 %v469, %v535
        %v602 = vadd.f32 %v470, %v536
        %v603 = vadd.f32 %v471, %v537
        %v604 = vadd.f32 %v472, %v538
        %v605 = vadd.f32 %v473, %v539
        %v606 = vadd.f32 %v474, %v540
        %v607 = vadd.f32 %v475, %v541
        %v608 = vadd.f32 %v476, %v542
        %v609 = vadd.f32 %v477, %v543
        %v610 = vadd.f32 %v478, %v544
        %v611 = vadd.f32 %v479, %v545
        %v612 = vadd.f32 %v480, %v546
        %v613 = vadd.f32 %v481, %v547
        %v614 = vadd.f32 %v482, %v548
        %v615 = vadd.f32 %v549, 1e-08
        %v616 = vadd.f32 %v550, 1e-08
        %v617 = vadd.f32 %v551, 1e-08
        %v618 = vadd.f32 %v552, 1e-08
        %v619 = vadd.f32 %v553, 1e-08
        %v620 = vadd.f32 %v554, 1e-08
        %v621 = vadd.f32 %v555, 1e-08
        %v622 = vadd.f32 %v556, 1e-08
        %v623 = vadd.f32 %v557, 1e-08
        %v624 = vadd.f32 %v558, 1e-08
        %v625 = vadd.f32 %v559, 1e-08
        %v626 = vadd.f32 %v560, 1e-08
        %v627 = vadd.f32 %v561, 1e-08
        %v628 = vadd.f32 %v562, 1e-08
        %v629 = vadd.f32 %v563, 1e-08
        %v630 = vadd.f32 %v564, 1e-08
        %v631 = vadd.f32 %v565, 1e-08
        %v632 = vadd.f32 %v566, 1e-08
        %v633 = vadd.f32 %v567, 1e-08
        %v634 = vadd.f32 %v568, 1e-08
        %v635 = vadd.f32 %v569, 1e-08
        %v636 = vadd.f32 %v570, 1e-08
        %v637 = vadd.f32 %v571, 1e-08
        %v638 = vadd.f32 %v572, 1e-08
        %v639 = vadd.f32 %v573, 1e-08
        %v640 = vadd.f32 %v574, 1e-08
        %v641 = vadd.f32 %v575, 1e-08
        %v642 = vadd.f32 %v576, 1e-08
        %v643 = vadd.f32 %v577, 1e-08
        %v644 = vadd.f32 %v578, 1e-08
        %v645 = vadd.f32 %v579, 1e-08
        %v646 = vadd.f32 %v580, 1e-08
        %v647 = vadd.f32 %v581, 1e-08
        %v648 = vadd.f32 %v582, 1e-08
        %v649 = vadd.f32 %v583, 1e-08
        %v650 = vadd.f32 %v584, 1e-08
        %v651 = vadd.f32 %v585, 1e-08
        %v652 = vadd.f32 %v586, 1e-08
        %v653 = vadd.f32 %v587, 1e-08
        %v654 = vadd.f32 %v588, 1e-08
        %v655 = vadd.f32 %v589, 1e-08
        %v656 = vadd.f32 %v590, 1e-08
        %v657 = vadd.f32 %v591, 1e-08
        %v658 = vadd.f32 %v592, 1e-08
        %v659 = vadd.f32 %v593, 1e-08
        %v660 = vadd.f32 %v594, 1e-08
        %v661 = vadd.f32 %v595, 1e-08
        %v662 = vadd.f32 %v596, 1e-08
        %v663 = vadd.f32 %v597, 1e-08
        %v664 = vadd.f32 %v598, 1e-08
        %v665 = vadd.f32 %v599, 1e-08
        %v666 = vadd.f32 %v600, 1e-08
        %v667 = vadd.f32 %v601, 1e-08
        %v668 = vadd.f32 %v602, 1e-08
        %v669 = vadd.f32 %v603, 1e-08
        %v670 = vadd.f32 %v604, 1e-08
        %v671 = vadd.f32 %v605, 1e-08
        %v672 = vadd.f32 %v606, 1e-08
        %v673 = vadd.f32 %v607, 1e-08
        %v674 = vadd.f32 %v608, 1e-08
        %v675 = vadd.f32 %v609, 1e-08
        %v676 = vadd.f32 %v610, 1e-08
        %v677 = vadd.f32 %v611, 1e-08
        %v678 = vadd.f32 %v612, 1e-08
        %v679 = vadd.f32 %v613, 1e-08
        %v680 = vadd.f32 %v614, 1e-08
        %v681 = vrsqrt.pop %v549
        %v682 = vmul.f32 %v549, %v681
        %vm683 = vcmp.eq.f32.partialorder %v549, inf
        %v684 = vsel %vm683, %v549, %v682
        %vm685 = vcmp.eq.f32.partialorder %v549, 0.0
        %v686 = vand.u32 %v549, 2147483648
        %v687 = vsel %vm685, %v686, %v684
        %v688 = vrsqrt.pop %v550
        %v689 = vmul.f32 %v550, %v688
        %vm690 = vcmp.eq.f32.partialorder %v550, inf
        %v691 = vsel %vm690, %v550, %v689
        %vm692 = vcmp.eq.f32.partialorder %v550, 0.0
        %v693 = vand.u32 %v550, 2147483648
        %v694 = vsel %vm692, %v693, %v691
        %v695 = vrsqrt.pop %v551
        %v696 = vmul.f32 %v551, %v695
        %vm697 = vcmp.eq.f32.partialorder %v551, inf
        %v698 = vsel %vm697, %v551, %v696
        %vm699 = vcmp.eq.f32.partialorder %v551, 0.0
        %v700 = vand.u32 %v551, 2147483648
        %v701 = vsel %vm699, %v700, %v698
        %v702 = vrsqrt.pop %v552
        %v703 = vmul.f32 %v552, %v702
        %vm704 = vcmp.eq.f32.partialorder %v552, inf
        %v705 = vsel %vm704, %v552, %v703
        %vm706 = vcmp.eq.f32.partialorder %v552, 0.0
        %v707 = vand.u32 %v552, 2147483648
        %v708 = vsel %vm706, %v707, %v705
        %v709 = vrsqrt.pop %v553
        %v710 = vmul.f32 %v553, %v709
        %vm711 = vcmp.eq.f32.partialorder %v553, inf
        %v712 = vsel %vm711, %v553, %v710
        %vm713 = vcmp.eq.f32.partialorder %v553, 0.0
        %v714 = vand.u32 %v553, 2147483648
        %v715 = vsel %vm713, %v714, %v712
        %v716 = vrsqrt.pop %v554
        %v717 = vmul.f32 %v554, %v716
        %vm718 = vcmp.eq.f32.partialorder %v554, inf
        %v719 = vsel %vm718, %v554, %v717
        %vm720 = vcmp.eq.f32.partialorder %v554, 0.0
        %v721 = vand.u32 %v554, 2147483648
        %v722 = vsel %vm720, %v721, %v719
        %v723 = vrsqrt.pop %v555
        %v724 = vmul.f32 %v555, %v723
        %vm725 = vcmp.eq.f32.partialorder %v555, inf
        %v726 = vsel %vm725, %v555, %v724
        %vm727 = vcmp.eq.f32.partialorder %v555, 0.0
        %v728 = vand.u32 %v555, 2147483648
        %v729 = vsel %vm727, %v728, %v726
        %v730 = vrsqrt.pop %v556
        %v731 = vmul.f32 %v556, %v730
        %vm732 = vcmp.eq.f32.partialorder %v556, inf
        %v733 = vsel %vm732, %v556, %v731
        %vm734 = vcmp.eq.f32.partialorder %v556, 0.0
        %v735 = vand.u32 %v556, 2147483648
        %v736 = vsel %vm734, %v735, %v733
        %v737 = vrsqrt.pop %v557
        %v738 = vmul.f32 %v557, %v737
        %vm739 = vcmp.eq.f32.partialorder %v557, inf
        %v740 = vsel %vm739, %v557, %v738
        %vm741 = vcmp.eq.f32.partialorder %v557, 0.0
        %v742 = vand.u32 %v557, 2147483648
        %v743 = vsel %vm741, %v742, %v740
        %v744 = vrsqrt.pop %v558
        %v745 = vmul.f32 %v558, %v744
        %vm746 = vcmp.eq.f32.partialorder %v558, inf
        %v747 = vsel %vm746, %v558, %v745
        %vm748 = vcmp.eq.f32.partialorder %v558, 0.0
        %v749 = vand.u32 %v558, 2147483648
        %v750 = vsel %vm748, %v749, %v747
        %v751 = vrsqrt.pop %v559
        %v752 = vmul.f32 %v559, %v751
        %vm753 = vcmp.eq.f32.partialorder %v559, inf
        %v754 = vsel %vm753, %v559, %v752
        %vm755 = vcmp.eq.f32.partialorder %v559, 0.0
        %v756 = vand.u32 %v559, 2147483648
        %v757 = vsel %vm755, %v756, %v754
        %v758 = vrsqrt.pop %v560
        %v759 = vmul.f32 %v560, %v758
        %vm760 = vcmp.eq.f32.partialorder %v560, inf
        %v761 = vsel %vm760, %v560, %v759
        %vm762 = vcmp.eq.f32.partialorder %v560, 0.0
        %v763 = vand.u32 %v560, 2147483648
        %v764 = vsel %vm762, %v763, %v761
        %v765 = vrsqrt.pop %v561
        %v766 = vmul.f32 %v561, %v765
        %vm767 = vcmp.eq.f32.partialorder %v561, inf
        %v768 = vsel %vm767, %v561, %v766
        %vm769 = vcmp.eq.f32.partialorder %v561, 0.0
        %v770 = vand.u32 %v561, 2147483648
        %v771 = vsel %vm769, %v770, %v768
        %v772 = vrsqrt.pop %v562
        %v773 = vmul.f32 %v562, %v772
        %vm774 = vcmp.eq.f32.partialorder %v562, inf
        %v775 = vsel %vm774, %v562, %v773
        %vm776 = vcmp.eq.f32.partialorder %v562, 0.0
        %v777 = vand.u32 %v562, 2147483648
        %v778 = vsel %vm776, %v777, %v775
        %v779 = vrsqrt.pop %v563
        %v780 = vmul.f32 %v563, %v779
        %vm781 = vcmp.eq.f32.partialorder %v563, inf
        %v782 = vsel %vm781, %v563, %v780
        %vm783 = vcmp.eq.f32.partialorder %v563, 0.0
        %v784 = vand.u32 %v563, 2147483648
        %v785 = vsel %vm783, %v784, %v782
        %v786 = vrsqrt.pop %v564
        %v787 = vmul.f32 %v564, %v786
        %vm788 = vcmp.eq.f32.partialorder %v564, inf
        %v789 = vsel %vm788, %v564, %v787
        %vm790 = vcmp.eq.f32.partialorder %v564, 0.0
        %v791 = vand.u32 %v564, 2147483648
        %v792 = vsel %vm790, %v791, %v789
        %v793 = vrsqrt.pop %v565
        %v794 = vmul.f32 %v565, %v793
        %vm795 = vcmp.eq.f32.partialorder %v565, inf
        %v796 = vsel %vm795, %v565, %v794
        %vm797 = vcmp.eq.f32.partialorder %v565, 0.0
        %v798 = vand.u32 %v565, 2147483648
        %v799 = vsel %vm797, %v798, %v796
        %v800 = vrsqrt.pop %v566
        %v801 = vmul.f32 %v566, %v800
        %vm802 = vcmp.eq.f32.partialorder %v566, inf
        %v803 = vsel %vm802, %v566, %v801
        %vm804 = vcmp.eq.f32.partialorder %v566, 0.0
        %v805 = vand.u32 %v566, 2147483648
        %v806 = vsel %vm804, %v805, %v803
        %v807 = vrsqrt.pop %v567
        %v808 = vmul.f32 %v567, %v807
        %vm809 = vcmp.eq.f32.partialorder %v567, inf
        %v810 = vsel %vm809, %v567, %v808
        %vm811 = vcmp.eq.f32.partialorder %v567, 0.0
        %v812 = vand.u32 %v567, 2147483648
        %v813 = vsel %vm811, %v812, %v810
        %v814 = vrsqrt.pop %v568
        %v815 = vmul.f32 %v568, %v814
        %vm816 = vcmp.eq.f32.partialorder %v568, inf
        %v817 = vsel %vm816, %v568, %v815
        %vm818 = vcmp.eq.f32.partialorder %v568, 0.0
        %v819 = vand.u32 %v568, 2147483648
        %v820 = vsel %vm818, %v819, %v817
        %v821 = vrsqrt.pop %v569
        %v822 = vmul.f32 %v569, %v821
        %vm823 = vcmp.eq.f32.partialorder %v569, inf
        %v824 = vsel %vm823, %v569, %v822
        %vm825 = vcmp.eq.f32.partialorder %v569, 0.0
        %v826 = vand.u32 %v569, 2147483648
        %v827 = vsel %vm825, %v826, %v824
        %v828 = vrsqrt.pop %v570
        %v829 = vmul.f32 %v570, %v828
        %vm830 = vcmp.eq.f32.partialorder %v570, inf
        %v831 = vsel %vm830, %v570, %v829
        %vm832 = vcmp.eq.f32.partialorder %v570, 0.0
        %v833 = vand.u32 %v570, 2147483648
        %v834 = vsel %vm832, %v833, %v831
        %v835 = vrsqrt.pop %v571
        %v836 = vmul.f32 %v571, %v835
        %vm837 = vcmp.eq.f32.partialorder %v571, inf
        %v838 = vsel %vm837, %v571, %v836
        %vm839 = vcmp.eq.f32.partialorder %v571, 0.0
        %v840 = vand.u32 %v571, 2147483648
        %v841 = vsel %vm839, %v840, %v838
        %v842 = vrsqrt.pop %v572
        %v843 = vmul.f32 %v572, %v842
        %vm844 = vcmp.eq.f32.partialorder %v572, inf
        %v845 = vsel %vm844, %v572, %v843
        %vm846 = vcmp.eq.f32.partialorder %v572, 0.0
        %v847 = vand.u32 %v572, 2147483648
        %v848 = vsel %vm846, %v847, %v845
        %v849 = vrsqrt.pop %v573
        %v850 = vmul.f32 %v573, %v849
        %vm851 = vcmp.eq.f32.partialorder %v573, inf
        %v852 = vsel %vm851, %v573, %v850
        %vm853 = vcmp.eq.f32.partialorder %v573, 0.0
        %v854 = vand.u32 %v573, 2147483648
        %v855 = vsel %vm853, %v854, %v852
        %v856 = vrsqrt.pop %v574
        %v857 = vmul.f32 %v574, %v856
        %vm858 = vcmp.eq.f32.partialorder %v574, inf
        %v859 = vsel %vm858, %v574, %v857
        %vm860 = vcmp.eq.f32.partialorder %v574, 0.0
        %v861 = vand.u32 %v574, 2147483648
        %v862 = vsel %vm860, %v861, %v859
        %v863 = vrsqrt.pop %v575
        %v864 = vmul.f32 %v575, %v863
        %vm865 = vcmp.eq.f32.partialorder %v575, inf
        %v866 = vsel %vm865, %v575, %v864
        %vm867 = vcmp.eq.f32.partialorder %v575, 0.0
        %v868 = vand.u32 %v575, 2147483648
        %v869 = vsel %vm867, %v868, %v866
        %v870 = vrsqrt.pop %v576
        %v871 = vmul.f32 %v576, %v870
        %vm872 = vcmp.eq.f32.partialorder %v576, inf
        %v873 = vsel %vm872, %v576, %v871
        %vm874 = vcmp.eq.f32.partialorder %v576, 0.0
        %v875 = vand.u32 %v576, 2147483648
        %v876 = vsel %vm874, %v875, %v873
        %v877 = vrsqrt.pop %v577
        %v878 = vmul.f32 %v577, %v877
        %vm879 = vcmp.eq.f32.partialorder %v577, inf
        %v880 = vsel %vm879, %v577, %v878
        %vm881 = vcmp.eq.f32.partialorder %v577, 0.0
        %v882 = vand.u32 %v577, 2147483648
        %v883 = vsel %vm881, %v882, %v880
        %v884 = vrsqrt.pop %v578
        %v885 = vmul.f32 %v578, %v884
        %vm886 = vcmp.eq.f32.partialorder %v578, inf
        %v887 = vsel %vm886, %v578, %v885
        %vm888 = vcmp.eq.f32.partialorder %v578, 0.0
        %v889 = vand.u32 %v578, 2147483648
        %v890 = vsel %vm888, %v889, %v887
        %v891 = vrsqrt.pop %v579
        %v892 = vmul.f32 %v579, %v891
        %vm893 = vcmp.eq.f32.partialorder %v579, inf
        %v894 = vsel %vm893, %v579, %v892
        %vm895 = vcmp.eq.f32.partialorder %v579, 0.0
        %v896 = vand.u32 %v579, 2147483648
        %v897 = vsel %vm895, %v896, %v894
        %v898 = vrsqrt.pop %v580
        %v899 = vmul.f32 %v580, %v898
        %vm900 = vcmp.eq.f32.partialorder %v580, inf
        %v901 = vsel %vm900, %v580, %v899
        %vm902 = vcmp.eq.f32.partialorder %v580, 0.0
        %v903 = vand.u32 %v580, 2147483648
        %v904 = vsel %vm902, %v903, %v901
        %v905 = vrsqrt.pop %v581
        %v906 = vmul.f32 %v581, %v905
        %vm907 = vcmp.eq.f32.partialorder %v581, inf
        %v908 = vsel %vm907, %v581, %v906
        %vm909 = vcmp.eq.f32.partialorder %v581, 0.0
        %v910 = vand.u32 %v581, 2147483648
        %v911 = vsel %vm909, %v910, %v908
        %v912 = vrsqrt.pop %v582
        %v913 = vmul.f32 %v582, %v912
        %vm914 = vcmp.eq.f32.partialorder %v582, inf
        %v915 = vsel %vm914, %v582, %v913
        %vm916 = vcmp.eq.f32.partialorder %v582, 0.0
        %v917 = vand.u32 %v582, 2147483648
        %v918 = vsel %vm916, %v917, %v915
        %v919 = vrsqrt.pop %v583
        %v920 = vmul.f32 %v583, %v919
        %vm921 = vcmp.eq.f32.partialorder %v583, inf
        %v922 = vsel %vm921, %v583, %v920
        %vm923 = vcmp.eq.f32.partialorder %v583, 0.0
        %v924 = vand.u32 %v583, 2147483648
        %v925 = vsel %vm923, %v924, %v922
        %v926 = vrsqrt.pop %v584
        %v927 = vmul.f32 %v584, %v926
        %vm928 = vcmp.eq.f32.partialorder %v584, inf
        %v929 = vsel %vm928, %v584, %v927
        %vm930 = vcmp.eq.f32.partialorder %v584, 0.0
        %v931 = vand.u32 %v584, 2147483648
        %v932 = vsel %vm930, %v931, %v929
        %v933 = vrsqrt.pop %v585
        %v934 = vmul.f32 %v585, %v933
        %vm935 = vcmp.eq.f32.partialorder %v585, inf
        %v936 = vsel %vm935, %v585, %v934
        %vm937 = vcmp.eq.f32.partialorder %v585, 0.0
        %v938 = vand.u32 %v585, 2147483648
        %v939 = vsel %vm937, %v938, %v936
        %v940 = vrsqrt.pop %v586
        %v941 = vmul.f32 %v586, %v940
        %vm942 = vcmp.eq.f32.partialorder %v586, inf
        %v943 = vsel %vm942, %v586, %v941
        %vm944 = vcmp.eq.f32.partialorder %v586, 0.0
        %v945 = vand.u32 %v586, 2147483648
        %v946 = vsel %vm944, %v945, %v943
        %v947 = vrsqrt.pop %v587
        %v948 = vmul.f32 %v587, %v947
        %vm949 = vcmp.eq.f32.partialorder %v587, inf
        %v950 = vsel %vm949, %v587, %v948
        %vm951 = vcmp.eq.f32.partialorder %v587, 0.0
        %v952 = vand.u32 %v587, 2147483648
        %v953 = vsel %vm951, %v952, %v950
        %v954 = vrsqrt.pop %v588
        %v955 = vmul.f32 %v588, %v954
        %vm956 = vcmp.eq.f32.partialorder %v588, inf
        %v957 = vsel %vm956, %v588, %v955
        %vm958 = vcmp.eq.f32.partialorder %v588, 0.0
        %v959 = vand.u32 %v588, 2147483648
        %v960 = vsel %vm958, %v959, %v957
        %v961 = vrsqrt.pop %v589
        %v962 = vmul.f32 %v589, %v961
        %vm963 = vcmp.eq.f32.partialorder %v589, inf
        %v964 = vsel %vm963, %v589, %v962
        %vm965 = vcmp.eq.f32.partialorder %v589, 0.0
        %v966 = vand.u32 %v589, 2147483648
        %v967 = vsel %vm965, %v966, %v964
        %v968 = vrsqrt.pop %v590
        %v969 = vmul.f32 %v590, %v968
        %vm970 = vcmp.eq.f32.partialorder %v590, inf
        %v971 = vsel %vm970, %v590, %v969
        %vm972 = vcmp.eq.f32.partialorder %v590, 0.0
        %v973 = vand.u32 %v590, 2147483648
        %v974 = vsel %vm972, %v973, %v971
        %v975 = vrsqrt.pop %v591
        %v976 = vmul.f32 %v591, %v975
        %vm977 = vcmp.eq.f32.partialorder %v591, inf
        %v978 = vsel %vm977, %v591, %v976
        %vm979 = vcmp.eq.f32.partialorder %v591, 0.0
        %v980 = vand.u32 %v591, 2147483648
        %v981 = vsel %vm979, %v980, %v978
        %v982 = vrsqrt.pop %v592
        %v983 = vmul.f32 %v592, %v982
        %vm984 = vcmp.eq.f32.partialorder %v592, inf
        %v985 = vsel %vm984, %v592, %v983
        %vm986 = vcmp.eq.f32.partialorder %v592, 0.0
        %v987 = vand.u32 %v592, 2147483648
        %v988 = vsel %vm986, %v987, %v985
        %v989 = vrsqrt.pop %v593
        %v990 = vmul.f32 %v593, %v989
        %vm991 = vcmp.eq.f32.partialorder %v593, inf
        %v992 = vsel %vm991, %v593, %v990
        %vm993 = vcmp.eq.f32.partialorder %v593, 0.0
        %v994 = vand.u32 %v593, 2147483648
        %v995 = vsel %vm993, %v994, %v992
        %v996 = vrsqrt.pop %v594
        %v997 = vmul.f32 %v594, %v996
        %vm998 = vcmp.eq.f32.partialorder %v594, inf
        %v999 = vsel %vm998, %v594, %v997
        %vm1000 = vcmp.eq.f32.partialorder %v594, 0.0
        %v1001 = vand.u32 %v594, 2147483648
        %v1002 = vsel %vm1000, %v1001, %v999
        %v1003 = vrsqrt.pop %v595
        %v1004 = vmul.f32 %v595, %v1003
        %vm1005 = vcmp.eq.f32.partialorder %v595, inf
        %v1006 = vsel %vm1005, %v595, %v1004
        %vm1007 = vcmp.eq.f32.partialorder %v595, 0.0
        %v1008 = vand.u32 %v595, 2147483648
        %v1009 = vsel %vm1007, %v1008, %v1006
        %v1010 = vrsqrt.pop %v596
        %v1011 = vmul.f32 %v596, %v1010
        %vm1012 = vcmp.eq.f32.partialorder %v596, inf
        %v1013 = vsel %vm1012, %v596, %v1011
        %vm1014 = vcmp.eq.f32.partialorder %v596, 0.0
        %v1015 = vand.u32 %v596, 2147483648
        %v1016 = vsel %vm1014, %v1015, %v1013
        %v1017 = vrsqrt.pop %v597
        %v1018 = vmul.f32 %v597, %v1017
        %vm1019 = vcmp.eq.f32.partialorder %v597, inf
        %v1020 = vsel %vm1019, %v597, %v1018
        %vm1021 = vcmp.eq.f32.partialorder %v597, 0.0
        %v1022 = vand.u32 %v597, 2147483648
        %v1023 = vsel %vm1021, %v1022, %v1020
        %v1024 = vrsqrt.pop %v598
        %v1025 = vmul.f32 %v598, %v1024
        %vm1026 = vcmp.eq.f32.partialorder %v598, inf
        %v1027 = vsel %vm1026, %v598, %v1025
        %vm1028 = vcmp.eq.f32.partialorder %v598, 0.0
        %v1029 = vand.u32 %v598, 2147483648
        %v1030 = vsel %vm1028, %v1029, %v1027
        %v1031 = vrsqrt.pop %v599
        %v1032 = vmul.f32 %v599, %v1031
        %vm1033 = vcmp.eq.f32.partialorder %v599, inf
        %v1034 = vsel %vm1033, %v599, %v1032
        %vm1035 = vcmp.eq.f32.partialorder %v599, 0.0
        %v1036 = vand.u32 %v599, 2147483648
        %v1037 = vsel %vm1035, %v1036, %v1034
        %v1038 = vrsqrt.pop %v600
        %v1039 = vmul.f32 %v600, %v1038
        %vm1040 = vcmp.eq.f32.partialorder %v600, inf
        %v1041 = vsel %vm1040, %v600, %v1039
        %vm1042 = vcmp.eq.f32.partialorder %v600, 0.0
        %v1043 = vand.u32 %v600, 2147483648
        %v1044 = vsel %vm1042, %v1043, %v1041
        %v1045 = vrsqrt.pop %v601
        %v1046 = vmul.f32 %v601, %v1045
        %vm1047 = vcmp.eq.f32.partialorder %v601, inf
        %v1048 = vsel %vm1047, %v601, %v1046
        %vm1049 = vcmp.eq.f32.partialorder %v601, 0.0
        %v1050 = vand.u32 %v601, 2147483648
        %v1051 = vsel %vm1049, %v1050, %v1048
        %v1052 = vrsqrt.pop %v602
        %v1053 = vmul.f32 %v602, %v1052
        %vm1054 = vcmp.eq.f32.partialorder %v602, inf
        %v1055 = vsel %vm1054, %v602, %v1053
        %vm1056 = vcmp.eq.f32.partialorder %v602, 0.0
        %v1057 = vand.u32 %v602, 2147483648
        %v1058 = vsel %vm1056, %v1057, %v1055
        %v1059 = vrsqrt.pop %v603
        %v1060 = vmul.f32 %v603, %v1059
        %vm1061 = vcmp.eq.f32.partialorder %v603, inf
        %v1062 = vsel %vm1061, %v603, %v1060
        %vm1063 = vcmp.eq.f32.partialorder %v603, 0.0
        %v1064 = vand.u32 %v603, 2147483648
        %v1065 = vsel %vm1063, %v1064, %v1062
        %v1066 = vrsqrt.pop %v604
        %v1067 = vmul.f32 %v604, %v1066
        %vm1068 = vcmp.eq.f32.partialorder %v604, inf
        %v1069 = vsel %vm1068, %v604, %v1067
        %vm1070 = vcmp.eq.f32.partialorder %v604, 0.0
        %v1071 = vand.u32 %v604, 2147483648
        %v1072 = vsel %vm1070, %v1071, %v1069
        %v1073 = vrsqrt.pop %v605
        %v1074 = vmul.f32 %v605, %v1073
        %vm1075 = vcmp.eq.f32.partialorder %v605, inf
        %v1076 = vsel %vm1075, %v605, %v1074
        %vm1077 = vcmp.eq.f32.partialorder %v605, 0.0
        %v1078 = vand.u32 %v605, 2147483648
        %v1079 = vsel %vm1077, %v1078, %v1076
        %v1080 = vrsqrt.pop %v606
        %v1081 = vmul.f32 %v606, %v1080
        %vm1082 = vcmp.eq.f32.partialorder %v606, inf
        %v1083 = vsel %vm1082, %v606, %v1081
        %vm1084 = vcmp.eq.f32.partialorder %v606, 0.0
        %v1085 = vand.u32 %v606, 2147483648
        %v1086 = vsel %vm1084, %v1085, %v1083
        %v1087 = vrsqrt.pop %v607
        %v1088 = vmul.f32 %v607, %v1087
        %vm1089 = vcmp.eq.f32.partialorder %v607, inf
        %v1090 = vsel %vm1089, %v607, %v1088
        %vm1091 = vcmp.eq.f32.partialorder %v607, 0.0
        %v1092 = vand.u32 %v607, 2147483648
        %v1093 = vsel %vm1091, %v1092, %v1090
        %v1094 = vrsqrt.pop %v608
        %v1095 = vmul.f32 %v608, %v1094
        %vm1096 = vcmp.eq.f32.partialorder %v608, inf
        %v1097 = vsel %vm1096, %v608, %v1095
        %vm1098 = vcmp.eq.f32.partialorder %v608, 0.0
        %v1099 = vand.u32 %v608, 2147483648
        %v1100 = vsel %vm1098, %v1099, %v1097
        %v1101 = vrsqrt.pop %v609
        %v1102 = vmul.f32 %v609, %v1101
        %vm1103 = vcmp.eq.f32.partialorder %v609, inf
        %v1104 = vsel %vm1103, %v609, %v1102
        %vm1105 = vcmp.eq.f32.partialorder %v609, 0.0
        %v1106 = vand.u32 %v609, 2147483648
        %v1107 = vsel %vm1105, %v1106, %v1104
        %v1108 = vrsqrt.pop %v610
        %v1109 = vmul.f32 %v610, %v1108
        %vm1110 = vcmp.eq.f32.partialorder %v610, inf
        %v1111 = vsel %vm1110, %v610, %v1109
        %vm1112 = vcmp.eq.f32.partialorder %v610, 0.0
        %v1113 = vand.u32 %v610, 2147483648
        %v1114 = vsel %vm1112, %v1113, %v1111
        %v1115 = vrsqrt.pop %v611
        %v1116 = vmul.f32 %v611, %v1115
        %vm1117 = vcmp.eq.f32.partialorder %v611, inf
        %v1118 = vsel %vm1117, %v611, %v1116
        %vm1119 = vcmp.eq.f32.partialorder %v611, 0.0
        %v1120 = vand.u32 %v611, 2147483648
        %v1121 = vsel %vm1119, %v1120, %v1118
        %v1122 = vrsqrt.pop %v612
        %v1123 = vmul.f32 %v612, %v1122
        %vm1124 = vcmp.eq.f32.partialorder %v612, inf
        %v1125 = vsel %vm1124, %v612, %v1123
        %vm1126 = vcmp.eq.f32.partialorder %v612, 0.0
        %v1127 = vand.u32 %v612, 2147483648
        %v1128 = vsel %vm1126, %v1127, %v1125
        %v1129 = vrsqrt.pop %v613
        %v1130 = vmul.f32 %v613, %v1129
        %vm1131 = vcmp.eq.f32.partialorder %v613, inf
        %v1132 = vsel %vm1131, %v613, %v1130
        %vm1133 = vcmp.eq.f32.partialorder %v613, 0.0
        %v1134 = vand.u32 %v613, 2147483648
        %v1135 = vsel %vm1133, %v1134, %v1132
        %v1136 = vrsqrt.pop %v614
        %v1137 = vmul.f32 %v614, %v1136
        %vm1138 = vcmp.eq.f32.partialorder %v614, inf
        %v1139 = vsel %vm1138, %v614, %v1137
        %vm1140 = vcmp.eq.f32.partialorder %v614, 0.0
        %v1141 = vand.u32 %v614, 2147483648
        %v1142 = vsel %vm1140, %v1141, %v1139
        %vm1143 = vcmask 64512
        %v1144 = vsel %vm1143, %v687, 0.0
        %v1145 = vsel %vm1143, %v694, 0.0
        %v1146 = vadd.f32 %v1144, %v1145
        %v1147 = vsel %vm1143, %v701, 0.0
        %v1148 = vadd.f32 %v1146, %v1147
        %v1149 = vsel %vm1143, %v708, 0.0
        %v1150 = vadd.f32 %v1148, %v1149
        %v1151 = vsel %vm1143, %v715, 0.0
        %v1152 = vadd.f32 %v1150, %v1151
        %v1153 = vsel %vm1143, %v722, 0.0
        %v1154 = vadd.f32 %v1152, %v1153
        %v1155 = vsel %vm1143, %v729, 0.0
        %v1156 = vadd.f32 %v1154, %v1155
        %v1157 = vsel %vm1143, %v736, 0.0
        %v1158 = vadd.f32 %v1156, %v1157
        %v1159 = vsel %vm1143, %v743, 0.0
        %v1160 = vadd.f32 %v1158, %v1159
        %v1161 = vsel %vm1143, %v750, 0.0
        %v1162 = vadd.f32 %v1160, %v1161
        %v1163 = vsel %vm1143, %v757, 0.0
        %v1164 = vadd.f32 %v1162, %v1163
        %v1165 = vsel %vm1143, %v764, 0.0
        %v1166 = vadd.f32 %v1164, %v1165
        %v1167 = vsel %vm1143, %v771, 0.0
        %v1168 = vadd.f32 %v1166, %v1167
        %v1169 = vsel %vm1143, %v778, 0.0
        %v1170 = vadd.f32 %v1168, %v1169
        %v1171 = vsel %vm1143, %v785, 0.0
        %v1172 = vadd.f32 %v1170, %v1171
        %v1173 = vsel %vm1143, %v792, 0.0
        %v1174 = vadd.f32 %v1172, %v1173
        %v1175 = vsel %vm1143, %v799, 0.0
        %v1176 = vadd.f32 %v1174, %v1175
        %v1177 = vsel %vm1143, %v806, 0.0
        %v1178 = vadd.f32 %v1176, %v1177
        %v1179 = vsel %vm1143, %v813, 0.0
        %v1180 = vadd.f32 %v1178, %v1179
        %v1181 = vsel %vm1143, %v820, 0.0
        %v1182 = vadd.f32 %v1180, %v1181
        %v1183 = vsel %vm1143, %v827, 0.0
        %v1184 = vadd.f32 %v1182, %v1183
        %v1185 = vsel %vm1143, %v834, 0.0
        %v1186 = vadd.f32 %v1184, %v1185
        %v1187 = vsel %vm1143, %v841, 0.0
        %v1188 = vadd.f32 %v1186, %v1187
        %v1189 = vsel %vm1143, %v848, 0.0
        %v1190 = vadd.f32 %v1188, %v1189
        %v1191 = vsel %vm1143, %v855, 0.0
        %v1192 = vadd.f32 %v1190, %v1191
        %v1193 = vsel %vm1143, %v862, 0.0
        %v1194 = vadd.f32 %v1192, %v1193
        %v1195 = vsel %vm1143, %v869, 0.0
        %v1196 = vadd.f32 %v1194, %v1195
        %v1197 = vsel %vm1143, %v876, 0.0
        %v1198 = vadd.f32 %v1196, %v1197
        %v1199 = vsel %vm1143, %v883, 0.0
        %v1200 = vadd.f32 %v1198, %v1199
        %v1201 = vsel %vm1143, %v890, 0.0
        %v1202 = vadd.f32 %v1200, %v1201
        %v1203 = vsel %vm1143, %v897, 0.0
        %v1204 = vadd.f32 %v1202, %v1203
        %v1205 = vsel %vm1143, %v904, 0.0
        %v1206 = vadd.f32 %v1204, %v1205
        %vm1207 = vcmask 57344
        %v1208 = vsel %vm1207, %v911, 0.0
        %v1209 = vadd.f32 %v1206, %v1208
        %v1210 = vrot.slane %v1209, 4
        %v1211 = vadd.f32 %v1209, %v1210
        %v1212 = vrot.slane %v1211, 2
        %v1213 = vadd.f32 %v1211, %v1212
        %v1214 = vrot.slane %v1213, 1
        %v1215 = vadd.f32 %v1213, %v1214
        %v1216 = vsel %vm1143, %v918, 0.0
        %v1217 = vsel %vm1143, %v925, 0.0
        %v1218 = vadd.f32 %v1216, %v1217
        %v1219 = vsel %vm1143, %v932, 0.0
        %v1220 = vadd.f32 %v1218, %v1219
        %v1221 = vsel %vm1143, %v939, 0.0
        %v1222 = vadd.f32 %v1220, %v1221
        %v1223 = vsel %vm1143, %v946, 0.0
        %v1224 = vadd.f32 %v1222, %v1223
        %v1225 = vsel %vm1143, %v953, 0.0
        %v1226 = vadd.f32 %v1224, %v1225
        %v1227 = vsel %vm1143, %v960, 0.0
        %v1228 = vadd.f32 %v1226, %v1227
        %v1229 = vsel %vm1143, %v967, 0.0
        %v1230 = vadd.f32 %v1228, %v1229
        %v1231 = vsel %vm1143, %v974, 0.0
        %v1232 = vadd.f32 %v1230, %v1231
        %v1233 = vsel %vm1143, %v981, 0.0
        %v1234 = vadd.f32 %v1232, %v1233
        %v1235 = vsel %vm1143, %v988, 0.0
        %v1236 = vadd.f32 %v1234, %v1235
        %v1237 = vsel %vm1143, %v995, 0.0
        %v1238 = vadd.f32 %v1236, %v1237
        %v1239 = vsel %vm1143, %v1002, 0.0
        %v1240 = vadd.f32 %v1238, %v1239
        %v1241 = vsel %vm1143, %v1009, 0.0
        %v1242 = vadd.f32 %v1240, %v1241
        %v1243 = vsel %vm1143, %v1016, 0.0
        %v1244 = vadd.f32 %v1242, %v1243
        %v1245 = vsel %vm1143, %v1023, 0.0
        %v1246 = vadd.f32 %v1244, %v1245
        %v1247 = vsel %vm1143, %v1030, 0.0
        %v1248 = vadd.f32 %v1246, %v1247
        %v1249 = vsel %vm1143, %v1037, 0.0
        %v1250 = vadd.f32 %v1248, %v1249
        %v1251 = vsel %vm1143, %v1044, 0.0
        %v1252 = vadd.f32 %v1250, %v1251
        %v1253 = vsel %vm1143, %v1051, 0.0
        %v1254 = vadd.f32 %v1252, %v1253
        %v1255 = vsel %vm1143, %v1058, 0.0
        %v1256 = vadd.f32 %v1254, %v1255
        %v1257 = vsel %vm1143, %v1065, 0.0
        %v1258 = vadd.f32 %v1256, %v1257
        %v1259 = vsel %vm1143, %v1072, 0.0
        %v1260 = vadd.f32 %v1258, %v1259
        %v1261 = vsel %vm1143, %v1079, 0.0
        %v1262 = vadd.f32 %v1260, %v1261
        %v1263 = vsel %vm1143, %v1086, 0.0
        %v1264 = vadd.f32 %v1262, %v1263
        %v1265 = vsel %vm1143, %v1093, 0.0
        %v1266 = vadd.f32 %v1264, %v1265
        %v1267 = vsel %vm1143, %v1100, 0.0
        %v1268 = vadd.f32 %v1266, %v1267
        %v1269 = vsel %vm1143, %v1107, 0.0
        %v1270 = vadd.f32 %v1268, %v1269
        %v1271 = vsel %vm1143, %v1114, 0.0
        %v1272 = vadd.f32 %v1270, %v1271
        %v1273 = vsel %vm1143, %v1121, 0.0
        %v1274 = vadd.f32 %v1272, %v1273
        %v1275 = vsel %vm1143, %v1128, 0.0
        %v1276 = vadd.f32 %v1274, %v1275
        %v1277 = vsel %vm1143, %v1135, 0.0
        %v1278 = vadd.f32 %v1276, %v1277
        %v1279 = vsel %vm1207, %v1142, 0.0
        %v1280 = vadd.f32 %v1278, %v1279
        %v1281 = vrot.slane %v1280, 4
        %v1282 = vadd.f32 %v1280, %v1281
        %v1283 = vrot.slane %v1282, 2
        %v1284 = vadd.f32 %v1282, %v1283
        %v1285 = vrot.slane %v1284, 1
        %v1286 = vadd.f32 %v1284, %v1285
        %vm1287 = vcmp.gt.f32.partialorder %v1215, 5.0
        %vm1288 = vcmp.gt.f32.partialorder %v1286, 5.0
        %1289 = vxpose.xlu0.b32.start [1/16] %v615, 128
        %1290 = vxpose.xlu0.b32.cont [2/16] %v616, 128
        %1291 = vxpose.xlu0.b32.cont [3/16] %v617, 128
        %1292 = vxpose.xlu0.b32.cont [4/16] %v618, 128
        %1293 = vxpose.xlu0.b32.cont [5/16] %v619, 128
        %1294 = vxpose.xlu0.b32.cont [6/16] %v620, 128
        %1295 = vxpose.xlu0.b32.cont [7/16] %v621, 128
        %1296 = vxpose.xlu0.b32.cont [8/16] %v622, 128
        %1297 = vxpose.xlu0.b32.cont [9/16] %v623, 128
        %1298 = vxpose.xlu0.b32.cont [10/16] %v624, 128
        %1299 = vxpose.xlu0.b32.cont [11/16] %v625, 128
        %1300 = vxpose.xlu0.b32.cont [12/16] %v626, 128
        %1301 = vxpose.xlu0.b32.cont [13/16] %v627, 128
        %1302 = vxpose.xlu0.b32.cont [14/16] %v628, 128
        %1303 = vxpose.xlu0.b32.cont [15/16] %v629, 128
        %1304 = vxpose.xlu0.b32.end [16/16] %v630, 128
        %v1305 = vpop.trf.xlu0
        %v1306 = vpop.trf.xlu0
        %v1307 = vpop.trf.xlu0
        %v1308 = vpop.trf.xlu0
        %v1309 = vpop.trf.xlu0
        %v1310 = vpop.trf.xlu0
        %v1311 = vpop.trf.xlu0
        %v1312 = vpop.trf.xlu0
        %v1313 = vpop.trf.xlu0
        %v1314 = vpop.trf.xlu0
        %v1315 = vpop.trf.xlu0
        %v1316 = vpop.trf.xlu0
        %v1317 = vpop.trf.xlu0
        %v1318 = vpop.trf.xlu0
        %v1319 = vpop.trf.xlu0
        %v1320 = vpop.trf.xlu0
        %1321 = vxpose.xlu0.b32.start [1/16] %v631, 128
        %1322 = vxpose.xlu0.b32.cont [2/16] %v632, 128
        %1323 = vxpose.xlu0.b32.cont [3/16] %v633, 128
        %1324 = vxpose.xlu0.b32.cont [4/16] %v634, 128
        %1325 = vxpose.xlu0.b32.cont [5/16] %v635, 128
        %1326 = vxpose.xlu0.b32.cont [6/16] %v636, 128
        %1327 = vxpose.xlu0.b32.cont [7/16] %v637, 128
        %1328 = vxpose.xlu0.b32.cont [8/16] %v638, 128
        %1329 = vxpose.xlu0.b32.cont [9/16] %v639, 128
        %1330 = vxpose.xlu0.b32.cont [10/16] %v640, 128
        %1331 = vxpose.xlu0.b32.cont [11/16] %v641, 128
        %1332 = vxpose.xlu0.b32.cont [12/16] %v642, 128
        %1333 = vxpose.xlu0.b32.cont [13/16] %v643, 128
        %1334 = vxpose.xlu0.b32.cont [14/16] %v644, 128
        %1335 = vxpose.xlu0.b32.cont [15/16] %v645, 128
        %1336 = vxpose.xlu0.b32.end [16/16] %v646, 128
        %v1337 = vpop.trf.xlu0
        %v1338 = vpop.trf.xlu0
        %v1339 = vpop.trf.xlu0
        %v1340 = vpop.trf.xlu0
        %v1341 = vpop.trf.xlu0
        %v1342 = vpop.trf.xlu0
        %v1343 = vpop.trf.xlu0
        %v1344 = vpop.trf.xlu0
        %v1345 = vpop.trf.xlu0
        %v1346 = vpop.trf.xlu0
        %v1347 = vpop.trf.xlu0
        %v1348 = vpop.trf.xlu0
        %v1349 = vpop.trf.xlu0
        %v1350 = vpop.trf.xlu0
        %v1351 = vpop.trf.xlu0
        %v1352 = vpop.trf.xlu0
        %1353 = vxpose.xlu0.b32.start [1/16] %v647, 128
        %1354 = vxpose.xlu0.b32.cont [2/16] 0.0, 128
        %1355 = vxpose.xlu0.b32.cont [3/16] 0.0, 128
        %1356 = vxpose.xlu0.b32.cont [4/16] 0.0, 128
        %1357 = vxpose.xlu0.b32.cont [5/16] 0.0, 128
        %1358 = vxpose.xlu0.b32.cont [6/16] 0.0, 128
        %1359 = vxpose.xlu0.b32.cont [7/16] 0.0, 128
        %1360 = vxpose.xlu0.b32.cont [8/16] 0.0, 128
        %1361 = vxpose.xlu0.b32.cont [9/16] 0.0, 128
        %1362 = vxpose.xlu0.b32.cont [10/16] 0.0, 128
        %1363 = vxpose.xlu0.b32.cont [11/16] 0.0, 128
        %1364 = vxpose.xlu0.b32.cont [12/16] 0.0, 128
        %1365 = vxpose.xlu0.b32.cont [13/16] 0.0, 128
        %1366 = vxpose.xlu0.b32.cont [14/16] 0.0, 128
        %1367 = vxpose.xlu0.b32.cont [15/16] 0.0, 128
        %1368 = vxpose.xlu0.b32.end [16/16] 0.0, 128
        %v1369 = vpop.trf.xlu0
        %v1370 = vpop.trf.xlu0
        %v1371 = vpop.trf.xlu0
        %v1372 = vpop.trf.xlu0
        %v1373 = vpop.trf.xlu0
        %v1374 = vpop.trf.xlu0
        %v1375 = vpop.trf.xlu0
        %v1376 = vpop.trf.xlu0
        %v1377 = vpop.trf.xlu0
        %v1378 = vpop.trf.xlu0
        %v1379 = vpop.trf.xlu0
        %v1380 = vpop.trf.xlu0
        %v1381 = vpop.trf.xlu0
        %v1382 = vpop.trf.xlu0
        %v1383 = vpop.trf.xlu0
        %v1384 = vpop.trf.xlu0
        %vm1385 = vcmask 7168
        %v1387 = vsel %vm1385, %v1369, 0
        %vm1389 = vcmask 1040384
        %v1391 = vsel %vm1389, %v284, 0
        %1393 = vmatprep.subr.mxu0 0.0
        %1394 = vmatpush1.msra.mxu0 %v252
        %1395 = vmatprep.subr.mxu0 0.0
        %1396 = vmatpush1.msra.mxu0 %v253
        %1397 = vmatprep.subr.mxu0 0.0
        %1398 = vmatpush1.msra.mxu0 %v254
        %1399 = vmatprep.subr.mxu0 0.0
        %1400 = vmatpush1.msra.mxu0 %v255
        %1401 = vmatprep.subr.mxu0 0.0
        %1402 = vmatpush1.msra.mxu0 %v256
        %1403 = vmatprep.subr.mxu0 0.0
        %1404 = vmatpush1.msra.mxu0 %v257
        %1405 = vmatprep.subr.mxu0 0.0
        %1406 = vmatpush1.msra.mxu0 %v258
        %1407 = vmatprep.subr.mxu0 0.0
        %1408 = vmatpush1.msra.mxu0 %v259
        %1409 = vmatprep.subr.mxu0 0.0
        %1410 = vmatpush1.msra.mxu0 %v260
        %1411 = vmatprep.subr.mxu0 0.0
        %1412 = vmatpush1.msra.mxu0 %v261
        %1413 = vmatprep.subr.mxu0 0.0
        %1414 = vmatpush1.msra.mxu0 %v262
        %1415 = vmatprep.subr.mxu0 0.0
        %1416 = vmatpush1.msra.mxu0 %v263
        %1417 = vmatprep.subr.mxu0 0.0
        %1418 = vmatpush1.msra.mxu0 %v264
        %1419 = vmatprep.subr.mxu0 0.0
        %1420 = vmatpush1.msra.mxu0 %v265
        %1421 = vmatprep.subr.mxu0 0.0
        %1422 = vmatpush1.msra.mxu0 %v266
        %1423 = vmatprep.subr.mxu0 0.0
        %1424 = vmatpush1.msra.mxu0 %v267
        %1425 = vmatprep.subr.mxu0 0.0
        %1426 = vmatpush1.msra.mxu0 %v268
        %1427 = vmatprep.subr.mxu0 0.0
        %1428 = vmatpush1.msra.mxu0 %v269
        %1429 = vmatprep.subr.mxu0 0.0
        %1430 = vmatpush1.msra.mxu0 %v270
        %1431 = vmatprep.subr.mxu0 0.0
        %1432 = vmatpush1.msra.mxu0 %v271
        %1433 = vmatprep.subr.mxu0 0.0
        %1434 = vmatpush1.msra.mxu0 %v272
        %1435 = vmatprep.subr.mxu0 0.0
        %1436 = vmatpush1.msra.mxu0 %v273
        %1437 = vmatprep.subr.mxu0 0.0
        %1438 = vmatpush1.msra.mxu0 %v274
        %1439 = vmatprep.subr.mxu0 0.0
        %1440 = vmatpush1.msra.mxu0 %v275
        %1441 = vmatprep.subr.mxu0 0.0
        %1442 = vmatpush1.msra.mxu0 %v276
        %1443 = vmatprep.subr.mxu0 0.0
        %1444 = vmatpush1.msra.mxu0 %v277
        %1445 = vmatprep.subr.mxu0 0.0
        %1446 = vmatpush1.msra.mxu0 %v278
        %1447 = vmatprep.subr.mxu0 0.0
        %1448 = vmatpush1.msra.mxu0 %v279
        %1449 = vmatprep.subr.mxu0 0.0
        %1450 = vmatpush1.msra.mxu0 %v280
        %1451 = vmatprep.subr.mxu0 0.0
        %1452 = vmatpush1.msra.mxu0 %v281
        %1453 = vmatprep.subr.mxu0 0.0
        %1454 = vmatpush1.msra.mxu0 %v282
        %1455 = vmatprep.subr.mxu0 0.0
        %1456 = vmatpush1.msra.mxu0 %v283
        %1457 = vmatprep.mubr.f32.mxu0 %v1337
        %1458 = vmatmul.mubr.f32.gmra.mrb[0].mxu0 %v1305
        %v1459 = vpop.f32.mrb[0].mxu0
        %v1460 = vadd.f32 0.0, %v1459
        %v1461 = vpop.f32.mrb[0].mxu0
        %1462 = vdwg.mxu0
        %1463 = vmatprep.subr.mxu0 0.0
        %1464 = vmatpush1.msra.mxu0 %v1391
        %1465 = vmatprep.subr.mxu0 0.0
        %1466 = vmatpush1.msra.mxu0 0.0
        %1467 = vmatprep.subr.mxu0 0.0
        %1468 = vmatpush1.msra.mxu0 0.0
        %1469 = vmatprep.subr.mxu0 0.0
        %1470 = vmatpush1.msra.mxu0 0.0
        %1471 = vmatprep.subr.mxu0 0.0
        %1472 = vmatpush1.msra.mxu0 0.0
        %1473 = vmatprep.subr.mxu0 0.0
        %1474 = vmatpush1.msra.mxu0 0.0
        %1475 = vmatprep.subr.mxu0 0.0
        %1476 = vmatpush1.msra.mxu0 0.0
        %1477 = vmatprep.subr.mxu0 0.0
        %1478 = vmatpush1.msra.mxu0 0.0
        %1479 = vmatprep.subr.mxu0 0.0
        %1480 = vmatpush1.msra.mxu0 0.0
        %1481 = vmatprep.subr.mxu0 0.0
        %1482 = vmatpush1.msra.mxu0 0.0
        %1483 = vmatprep.subr.mxu0 0.0
        %1484 = vmatpush1.msra.mxu0 0.0
        %1485 = vmatprep.subr.mxu0 0.0
        %1486 = vmatpush1.msra.mxu0 0.0
        %1487 = vmatprep.subr.mxu0 0.0
        %1488 = vmatpush1.msra.mxu0 0.0
        %1489 = vmatprep.subr.mxu0 0.0
        %1490 = vmatpush1.msra.mxu0 0.0
        %1491 = vmatprep.subr.mxu0 0.0
        %1492 = vmatpush1.msra.mxu0 0.0
        %1493 = vmatprep.subr.mxu0 0.0
        %1494 = vmatpush1.msra.mxu0 0.0
        %1495 = vmatprep.subr.mxu0 0.0
        %1496 = vmatpush1.msra.mxu0 0.0
        %1497 = vmatprep.subr.mxu0 0.0
        %1498 = vmatpush1.msra.mxu0 0.0
        %1499 = vmatprep.subr.mxu0 0.0
        %1500 = vmatpush1.msra.mxu0 0.0
        %1501 = vmatprep.subr.mxu0 0.0
        %1502 = vmatpush1.msra.mxu0 0.0
        %1503 = vmatprep.subr.mxu0 0.0
        %1504 = vmatpush1.msra.mxu0 0.0
        %1505 = vmatprep.subr.mxu0 0.0
        %1506 = vmatpush1.msra.mxu0 0.0
        %1507 = vmatprep.subr.mxu0 0.0
        %1508 = vmatpush1.msra.mxu0 0.0
        %1509 = vmatprep.subr.mxu0 0.0
        %1510 = vmatpush1.msra.mxu0 0.0
        %1511 = vmatprep.subr.mxu0 0.0
        %1512 = vmatpush1.msra.mxu0 0.0
        %1513 = vmatprep.subr.mxu0 0.0
        %1514 = vmatpush1.msra.mxu0 0.0
        %1515 = vmatprep.subr.mxu0 0.0
        %1516 = vmatpush1.msra.mxu0 0.0
        %1517 = vmatprep.subr.mxu0 0.0
        %1518 = vmatpush1.msra.mxu0 0.0
        %1519 = vmatprep.subr.mxu0 0.0
        %1520 = vmatpush1.msra.mxu0 0.0
        %1521 = vmatprep.subr.mxu0 0.0
        %1522 = vmatpush1.msra.mxu0 0.0
        %1523 = vmatprep.subr.mxu0 0.0
        %1524 = vmatpush1.msra.mxu0 0.0
        %1525 = vmatprep.subr.mxu0 0.0
        %1526 = vmatpush1.msra.mxu0 0.0
        %1527 = vmatprep.mubr.f32.mxu0 0.0
        %1528 = vmatmul.mubr.f32.gmra.mrb[0].mxu0 %v1387
        %v1529 = vpop.f32.mrb[0].mxu0
        %v1530 = vadd.f32 %v1460, %v1529
        %v1531 = vpop.f32.mrb[0].mxu0
        %1532 = vdwg.mxu0
        %v1533 = vmul.f32 %v1530, %v1530
        %1535 = vrot.lane.b32.xlu0 %v1533, 110
        %v1536 = vpop.permute.xlu0 %1535
        %v1538 = vadd.f32 %v1533, %v1536
        %v1539 = vrsqrt.pop %v1538
        %v1540 = vmul.f32 %v1538, %v1539
        %vm1541 = vcmp.eq.f32.partialorder %v1538, inf
        %v1542 = vsel %vm1541, %v1538, %v1540
        %vm1543 = vcmp.eq.f32.partialorder %v1538, 0.0
        %v1544 = vand.u32 %v1538, 2147483648
        %v1545 = vsel %vm1543, %v1544, %v1542
        %v1546 = vadd.f32 %v1530, 1e-08
        %v1547 = vrcp.pop %v1546
        %1549 = vset.pattern.permute.xlu0 36
        %1550 = vperm.xlu0 %1549, %v1547
        %v1551 = vpop.permute.xlu0 %1550
        %v1553 = vmul.f32 %v1545, %v1551
        %vm1554 = vcmask 146432
        %v1555 = vsel %vm1554, %v1553, -inf
        %1556 = vmax.xlane.f32.xlu0 %v1555
        %v1557 = vpop.xlane.xlu0 %1556
        %1558 = vxpose.xlu0.b32.start [1/16] %v648, 128
        %1559 = vxpose.xlu0.b32.cont [2/16] %v649, 128
        %1560 = vxpose.xlu0.b32.cont [3/16] %v650, 128
        %1561 = vxpose.xlu0.b32.cont [4/16] %v651, 128
        %1562 = vxpose.xlu0.b32.cont [5/16] %v652, 128
        %1563 = vxpose.xlu0.b32.cont [6/16] %v653, 128
        %1564 = vxpose.xlu0.b32.cont [7/16] %v654, 128
        %1565 = vxpose.xlu0.b32.cont [8/16] %v655, 128
        %1566 = vxpose.xlu0.b32.cont [9/16] %v656, 128
        %1567 = vxpose.xlu0.b32.cont [10/16] %v657, 128
        %1568 = vxpose.xlu0.b32.cont [11/16] %v658, 128
        %1569 = vxpose.xlu0.b32.cont [12/16] %v659, 128
        %1570 = vxpose.xlu0.b32.cont [13/16] %v660, 128
        %1571 = vxpose.xlu0.b32.cont [14/16] %v661, 128
        %1572 = vxpose.xlu0.b32.cont [15/16] %v662, 128
        %1573 = vxpose.xlu0.b32.end [16/16] %v663, 128
        %v1574 = vpop.trf.xlu0
        %v1575 = vpop.trf.xlu0
        %v1576 = vpop.trf.xlu0
        %v1577 = vpop.trf.xlu0
        %v1578 = vpop.trf.xlu0
        %v1579 = vpop.trf.xlu0
        %v1580 = vpop.trf.xlu0
        %v1581 = vpop.trf.xlu0
        %v1582 = vpop.trf.xlu0
        %v1583 = vpop.trf.xlu0
        %v1584 = vpop.trf.xlu0
        %v1585 = vpop.trf.xlu0
        %v1586 = vpop.trf.xlu0
        %v1587 = vpop.trf.xlu0
        %v1588 = vpop.trf.xlu0
        %v1589 = vpop.trf.xlu0
        %1590 = vxpose.xlu0.b32.start [1/16] %v664, 128
        %1591 = vxpose.xlu0.b32.cont [2/16] %v665, 128
        %1592 = vxpose.xlu0.b32.cont [3/16] %v666, 128
        %1593 = vxpose.xlu0.b32.cont [4/16] %v667, 128
        %1594 = vxpose.xlu0.b32.cont [5/16] %v668, 128
        %1595 = vxpose.xlu0.b32.cont [6/16] %v669, 128
        %1596 = vxpose.xlu0.b32.cont [7/16] %v670, 128
        %1597 = vxpose.xlu0.b32.cont [8/16] %v671, 128
        %1598 = vxpose.xlu0.b32.cont [9/16] %v672, 128
        %1599 = vxpose.xlu0.b32.cont [10/16] %v673, 128
        %1600 = vxpose.xlu0.b32.cont [11/16] %v674, 128
        %1601 = vxpose.xlu0.b32.cont [12/16] %v675, 128
        %1602 = vxpose.xlu0.b32.cont [13/16] %v676, 128
        %1603 = vxpose.xlu0.b32.cont [14/16] %v677, 128
        %1604 = vxpose.xlu0.b32.cont [15/16] %v678, 128
        %1605 = vxpose.xlu0.b32.end [16/16] %v679, 128
        %v1606 = vpop.trf.xlu0
        %v1607 = vpop.trf.xlu0
        %v1608 = vpop.trf.xlu0
        %v1609 = vpop.trf.xlu0
        %v1610 = vpop.trf.xlu0
        %v1611 = vpop.trf.xlu0
        %v1612 = vpop.trf.xlu0
        %v1613 = vpop.trf.xlu0
        %v1614 = vpop.trf.xlu0
        %v1615 = vpop.trf.xlu0
        %v1616 = vpop.trf.xlu0
        %v1617 = vpop.trf.xlu0
        %v1618 = vpop.trf.xlu0
        %v1619 = vpop.trf.xlu0
        %v1620 = vpop.trf.xlu0
        %v1621 = vpop.trf.xlu0
        %1622 = vxpose.xlu0.b32.start [1/16] %v680, 128
        %1623 = vxpose.xlu0.b32.cont [2/16] 0.0, 128
        %1624 = vxpose.xlu0.b32.cont [3/16] 0.0, 128
        %1625 = vxpose.xlu0.b32.cont [4/16] 0.0, 128
        %1626 = vxpose.xlu0.b32.cont [5/16] 0.0, 128
        %1627 = vxpose.xlu0.b32.cont [6/16] 0.0, 128
        %1628 = vxpose.xlu0.b32.cont [7/16] 0.0, 128
        %1629 = vxpose.xlu0.b32.cont [8/16] 0.0, 128
        %1630 = vxpose.xlu0.b32.cont [9/16] 0.0, 128
        %1631 = vxpose.xlu0.b32.cont [10/16] 0.0, 128
        %1632 = vxpose.xlu0.b32.cont [11/16] 0.0, 128
        %1633 = vxpose.xlu0.b32.cont [12/16] 0.0, 128
        %1634 = vxpose.xlu0.b32.cont [13/16] 0.0, 128
        %1635 = vxpose.xlu0.b32.cont [14/16] 0.0, 128
        %1636 = vxpose.xlu0.b32.cont [15/16] 0.0, 128
        %1637 = vxpose.xlu0.b32.end [16/16] 0.0, 128
        %v1638 = vpop.trf.xlu0
        %v1639 = vpop.trf.xlu0
        %v1640 = vpop.trf.xlu0
        %v1641 = vpop.trf.xlu0
        %v1642 = vpop.trf.xlu0
        %v1643 = vpop.trf.xlu0
        %v1644 = vpop.trf.xlu0
        %v1645 = vpop.trf.xlu0
        %v1646 = vpop.trf.xlu0
        %v1647 = vpop.trf.xlu0
        %v1648 = vpop.trf.xlu0
        %v1649 = vpop.trf.xlu0
        %v1650 = vpop.trf.xlu0
        %v1651 = vpop.trf.xlu0
        %v1652 = vpop.trf.xlu0
        %v1653 = vpop.trf.xlu0
        %v1655 = vsel %vm1385, %v1638, 0
        %1657 = vmatprep.subr.mxu0 0.0
        %1658 = vmatpush1.msra.mxu0 %v252
        %1659 = vmatprep.subr.mxu0 0.0
        %1660 = vmatpush1.msra.mxu0 %v253
        %1661 = vmatprep.subr.mxu0 0.0
        %1662 = vmatpush1.msra.mxu0 %v254
        %1663 = vmatprep.subr.mxu0 0.0
        %1664 = vmatpush1.msra.mxu0 %v255
        %1665 = vmatprep.subr.mxu0 0.0
        %1666 = vmatpush1.msra.mxu0 %v256
        %1667 = vmatprep.subr.mxu0 0.0
        %1668 = vmatpush1.msra.mxu0 %v257
        %1669 = vmatprep.subr.mxu0 0.0
        %1670 = vmatpush1.msra.mxu0 %v258
        %1671 = vmatprep.subr.mxu0 0.0
        %1672 = vmatpush1.msra.mxu0 %v259
        %1673 = vmatprep.subr.mxu0 0.0
        %1674 = vmatpush1.msra.mxu0 %v260
        %1675 = vmatprep.subr.mxu0 0.0
        %1676 = vmatpush1.msra.mxu0 %v261
        %1677 = vmatprep.subr.mxu0 0.0
        %1678 = vmatpush1.msra.mxu0 %v262
        %1679 = vmatprep.subr.mxu0 0.0
        %1680 = vmatpush1.msra.mxu0 %v263
        %1681 = vmatprep.subr.mxu0 0.0
        %1682 = vmatpush1.msra.mxu0 %v264
        %1683 = vmatprep.subr.mxu0 0.0
        %1684 = vmatpush1.msra.mxu0 %v265
        %1685 = vmatprep.subr.mxu0 0.0
        %1686 = vmatpush1.msra.mxu0 %v266
        %1687 = vmatprep.subr.mxu0 0.0
        %1688 = vmatpush1.msra.mxu0 %v267
        %1689 = vmatprep.subr.mxu0 0.0
        %1690 = vmatpush1.msra.mxu0 %v268
        %1691 = vmatprep.subr.mxu0 0.0
        %1692 = vmatpush1.msra.mxu0 %v269
        %1693 = vmatprep.subr.mxu0 0.0
        %1694 = vmatpush1.msra.mxu0 %v270
        %1695 = vmatprep.subr.mxu0 0.0
        %1696 = vmatpush1.msra.mxu0 %v271
        %1697 = vmatprep.subr.mxu0 0.0
        %1698 = vmatpush1.msra.mxu0 %v272
        %1699 = vmatprep.subr.mxu0 0.0
        %1700 = vmatpush1.msra.mxu0 %v273
        %1701 = vmatprep.subr.mxu0 0.0
        %1702 = vmatpush1.msra.mxu0 %v274
        %1703 = vmatprep.subr.mxu0 0.0
        %1704 = vmatpush1.msra.mxu0 %v275
        %1705 = vmatprep.subr.mxu0 0.0
        %1706 = vmatpush1.msra.mxu0 %v276
        %1707 = vmatprep.subr.mxu0 0.0
        %1708 = vmatpush1.msra.mxu0 %v277
        %1709 = vmatprep.subr.mxu0 0.0
        %1710 = vmatpush1.msra.mxu0 %v278
        %1711 = vmatprep.subr.mxu0 0.0
        %1712 = vmatpush1.msra.mxu0 %v279
        %1713 = vmatprep.subr.mxu0 0.0
        %1714 = vmatpush1.msra.mxu0 %v280
        %1715 = vmatprep.subr.mxu0 0.0
        %1716 = vmatpush1.msra.mxu0 %v281
        %1717 = vmatprep.subr.mxu0 0.0
        %1718 = vmatpush1.msra.mxu0 %v282
        %1719 = vmatprep.subr.mxu0 0.0
        %1720 = vmatpush1.msra.mxu0 %v283
        %1721 = vmatprep.mubr.f32.mxu0 %v1606
        %1722 = vmatmul.mubr.f32.gmra.mrb[0].mxu0 %v1574
        %v1723 = vpop.f32.mrb[0].mxu0
        %v1724 = vadd.f32 0.0, %v1723
        %v1725 = vpop.f32.mrb[0].mxu0
        %1726 = vdwg.mxu0
        %1727 = vmatprep.subr.mxu0 0.0
        %1728 = vmatpush1.msra.mxu0 %v1391
        %1729 = vmatprep.subr.mxu0 0.0
        %1730 = vmatpush1.msra.mxu0 0.0
        %1731 = vmatprep.subr.mxu0 0.0
        %1732 = vmatpush1.msra.mxu0 0.0
        %1733 = vmatprep.subr.mxu0 0.0
        %1734 = vmatpush1.msra.mxu0 0.0
        %1735 = vmatprep.subr.mxu0 0.0
        %1736 = vmatpush1.msra.mxu0 0.0
        %1737 = vmatprep.subr.mxu0 0.0
        %1738 = vmatpush1.msra.mxu0 0.0
        %1739 = vmatprep.subr.mxu0 0.0
        %1740 = vmatpush1.msra.mxu0 0.0
        %1741 = vmatprep.subr.mxu0 0.0
        %1742 = vmatpush1.msra.mxu0 0.0
        %1743 = vmatprep.subr.mxu0 0.0
        %1744 = vmatpush1.msra.mxu0 0.0
        %1745 = vmatprep.subr.mxu0 0.0
        %1746 = vmatpush1.msra.mxu0 0.0
        %1747 = vmatprep.subr.mxu0 0.0
        %1748 = vmatpush1.msra.mxu0 0.0
        %1749 = vmatprep.subr.mxu0 0.0
        %1750 = vmatpush1.msra.mxu0 0.0
        %1751 = vmatprep.subr.mxu0 0.0
        %1752 = vmatpush1.msra.mxu0 0.0
        %1753 = vmatprep.subr.mxu0 0.0
        %1754 = vmatpush1.msra.mxu0 0.0
        %1755 = vmatprep.subr.mxu0 0.0
        %1756 = vmatpush1.msra.mxu0 0.0
        %1757 = vmatprep.subr.mxu0 0.0
        %1758 = vmatpush1.msra.mxu0 0.0
        %1759 = vmatprep.subr.mxu0 0.0
        %1760 = vmatpush1.msra.mxu0 0.0
        %1761 = vmatprep.subr.mxu0 0.0
        %1762 = vmatpush1.msra.mxu0 0.0
        %1763 = vmatprep.subr.mxu0 0.0
        %1764 = vmatpush1.msra.mxu0 0.0
        %1765 = vmatprep.subr.mxu0 0.0
        %1766 = vmatpush1.msra.mxu0 0.0
        %1767 = vmatprep.subr.mxu0 0.0
        %1768 = vmatpush1.msra.mxu0 0.0
        %1769 = vmatprep.subr.mxu0 0.0
        %1770 = vmatpush1.msra.mxu0 0.0
        %1771 = vmatprep.subr.mxu0 0.0
        %1772 = vmatpush1.msra.mxu0 0.0
        %1773 = vmatprep.subr.mxu0 0.0
        %1774 = vmatpush1.msra.mxu0 0.0
        %1775 = vmatprep.subr.mxu0 0.0
        %1776 = vmatpush1.msra.mxu0 0.0
        %1777 = vmatprep.subr.mxu0 0.0
        %1778 = vmatpush1.msra.mxu0 0.0
        %1779 = vmatprep.subr.mxu0 0.0
        %1780 = vmatpush1.msra.mxu0 0.0
        %1781 = vmatprep.subr.mxu0 0.0
        %1782 = vmatpush1.msra.mxu0 0.0
        %1783 = vmatprep.subr.mxu0 0.0
        %1784 = vmatpush1.msra.mxu0 0.0
        %1785 = vmatprep.subr.mxu0 0.0
        %1786 = vmatpush1.msra.mxu0 0.0
        %1787 = vmatprep.subr.mxu0 0.0
        %1788 = vmatpush1.msra.mxu0 0.0
        %1789 = vmatprep.subr.mxu0 0.0
        %1790 = vmatpush1.msra.mxu0 0.0
        %1791 = vmatprep.mubr.f32.mxu0 0.0
        %1792 = vmatmul.mubr.f32.gmra.mrb[0].mxu0 %v1655
        %v1793 = vpop.f32.mrb[0].mxu0
        %v1794 = vadd.f32 %v1724, %v1793
        %v1795 = vpop.f32.mrb[0].mxu0
        %1796 = vdwg.mxu0
        %v1797 = vmul.f32 %v1794, %v1794
        %1799 = vrot.lane.b32.xlu0 %v1797, 110
        %v1800 = vpop.permute.xlu0 %1799
        %v1802 = vadd.f32 %v1797, %v1800
        %v1803 = vrsqrt.pop %v1802
        %v1804 = vmul.f32 %v1802, %v1803
        %vm1805 = vcmp.eq.f32.partialorder %v1802, inf
        %v1806 = vsel %vm1805, %v1802, %v1804
        %vm1807 = vcmp.eq.f32.partialorder %v1802, 0.0
        %v1808 = vand.u32 %v1802, 2147483648
        %v1809 = vsel %vm1807, %v1808, %v1806
        %v1810 = vadd.f32 %v1794, 1e-08
        %v1811 = vrcp.pop %v1810
        %1813 = vset.pattern.permute.xlu0 36
        %1814 = vperm.xlu0 %1813, %v1811
        %v1815 = vpop.permute.xlu0 %1814
        %v1817 = vmul.f32 %v1809, %v1815
        %v1818 = vsel %vm1554, %v1817, -inf
        %1819 = vmax.xlane.f32.xlu0 %v1818
        %v1820 = vpop.xlane.xlu0 %1819
        %v1821 = vsel %vm1385, %v1557, %v1820
        %vm1822 = vcmask 15360
        %1823 = vst.msk [vmem:[#allocation2] sm:$0xff] %vm1822, %v1821
        %v1824 = vld [vmem:[#allocation2] sm:$0x1]
        %v1825 = vmul.f32 %v1824, 0.05
        %v1826 = vadd.f32 %v1825, 0.0
        %v1827 = vmul.f32 %v1824, 0.5
        %v1828 = vadd.f32 %v1827, 0.0
        %vm1829 = vcmp.gt.f32.partialorder %v1824, 0.0
        %v1830 = vsel %vm1829, %v1826, %v1828
        %vm1831 = vcmask 8192
        %1832 = vst.msk [vmem:[#allocation2] sm:$0x1] %vm1831, %v1830
        %v1833 = vld [vmem:[#allocation2 + $0x1] sm:$0x1]
        %v1834 = vmul.f32 %v1830, 0.95
        %v1835 = vmul.f32 %v1833, 0.05
        %v1836 = vadd.f32 %v1834, %v1835
        %v1837 = vmul.f32 %v1830, 0.5
        %v1838 = vmul.f32 %v1833, 0.5
        %v1839 = vadd.f32 %v1837, %v1838
        %vm1840 = vcmp.gt.f32.partialorder %v1833, %v1830
        %v1841 = vsel %vm1840, %v1836, %v1839
        %1842 = vst.msk [vmem:[#allocation2 + $0x1] sm:$0x1] %vm1831, %v1841
        %v1843 = vld [vmem:[#allocation2 + $0x2] sm:$0x1]
        %v1844 = vmul.f32 %v1841, 0.95
        %v1845 = vmul.f32 %v1843, 0.05
        %v1846 = vadd.f32 %v1844, %v1845
        %v1847 = vmul.f32 %v1841, 0.5
        %v1848 = vmul.f32 %v1843, 0.5
        %v1849 = vadd.f32 %v1847, %v1848
        %vm1850 = vcmp.gt.f32.partialorder %v1843, %v1841
        %v1851 = vsel %vm1850, %v1846, %v1849
        %1852 = vst.msk [vmem:[#allocation2 + $0x2] sm:$0x1] %vm1831, %v1851
        %v1853 = vld [vmem:[#allocation2 + $0x3] sm:$0x1]
        %v1854 = vmul.f32 %v1851, 0.95
        %v1855 = vmul.f32 %v1853, 0.05
        %v1856 = vadd.f32 %v1854, %v1855
        %v1857 = vmul.f32 %v1851, 0.5
        %v1858 = vmul.f32 %v1853, 0.5
        %v1859 = vadd.f32 %v1857, %v1858
        %vm1860 = vcmp.gt.f32.partialorder %v1853, %v1851
        %v1861 = vsel %vm1860, %v1856, %v1859
        %1862 = vst.msk [vmem:[#allocation2 + $0x3] sm:$0x1] %vm1831, %v1861
        %v1863 = vld [vmem:[#allocation2 + $0x4] sm:$0x1]
        %v1864 = vmul.f32 %v1861, 0.95
        %v1865 = vmul.f32 %v1863, 0.05
        %v1866 = vadd.f32 %v1864, %v1865
        %v1867 = vmul.f32 %v1861, 0.5
        %v1868 = vmul.f32 %v1863, 0.5
        %v1869 = vadd.f32 %v1867, %v1868
        %vm1870 = vcmp.gt.f32.partialorder %v1863, %v1861
        %v1871 = vsel %vm1870, %v1866, %v1869
        %1872 = vst.msk [vmem:[#allocation2 + $0x4] sm:$0x1] %vm1831, %v1871
        %v1873 = vld [vmem:[#allocation2 + $0x5] sm:$0x1]
        %v1874 = vmul.f32 %v1871, 0.95
        %v1875 = vmul.f32 %v1873, 0.05
        %v1876 = vadd.f32 %v1874, %v1875
        %v1877 = vmul.f32 %v1871, 0.5
        %v1878 = vmul.f32 %v1873, 0.5
        %v1879 = vadd.f32 %v1877, %v1878
        %vm1880 = vcmp.gt.f32.partialorder %v1873, %v1871
        %v1881 = vsel %vm1880, %v1876, %v1879
        %1882 = vst.msk [vmem:[#allocation2 + $0x5] sm:$0x1] %vm1831, %v1881
        %v1883 = vld [vmem:[#allocation2 + $0x6] sm:$0x1]
        %v1884 = vmul.f32 %v1881, 0.95
        %v1885 = vmul.f32 %v1883, 0.05
        %v1886 = vadd.f32 %v1884, %v1885
        %v1887 = vmul.f32 %v1881, 0.5
        %v1888 = vmul.f32 %v1883, 0.5
        %v1889 = vadd.f32 %v1887, %v1888
        %vm1890 = vcmp.gt.f32.partialorder %v1883, %v1881
        %v1891 = vsel %vm1890, %v1886, %v1889
        %1892 = vst.msk [vmem:[#allocation2 + $0x6] sm:$0x1] %vm1831, %v1891
        %v1893 = vld [vmem:[#allocation2 + $0x7] sm:$0x1]
        %v1894 = vmul.f32 %v1891, 0.95
        %v1895 = vmul.f32 %v1893, 0.05
        %v1896 = vadd.f32 %v1894, %v1895
        %v1897 = vmul.f32 %v1891, 0.5
        %v1898 = vmul.f32 %v1893, 0.5
        %v1899 = vadd.f32 %v1897, %v1898
        %vm1900 = vcmp.gt.f32.partialorder %v1893, %v1891
        %v1901 = vsel %vm1900, %v1896, %v1899
        %1902 = vst.msk [vmem:[#allocation2 + $0x7] sm:$0x1] %vm1831, %v1901
        %v1903 = vld [vmem:[#allocation2] sm:$0xff]
        %1904 = vxpose.xlu0.b32.start [1/16] %v1903, 128
        %1905 = vxpose.xlu0.b32.cont [2/16] 0.0, 128
        %1906 = vxpose.xlu0.b32.cont [3/16] 0.0, 128
        %1907 = vxpose.xlu0.b32.cont [4/16] 0.0, 128
        %1908 = vxpose.xlu0.b32.cont [5/16] 0.0, 128
        %1909 = vxpose.xlu0.b32.cont [6/16] 0.0, 128
        %1910 = vxpose.xlu0.b32.cont [7/16] 0.0, 128
        %1911 = vxpose.xlu0.b32.cont [8/16] 0.0, 128
        %1912 = vxpose.xlu0.b32.cont [9/16] 0.0, 128
        %1913 = vxpose.xlu0.b32.cont [10/16] 0.0, 128
        %1914 = vxpose.xlu0.b32.cont [11/16] 0.0, 128
        %1915 = vxpose.xlu0.b32.cont [12/16] 0.0, 128
        %1916 = vxpose.xlu0.b32.cont [13/16] 0.0, 128
        %1917 = vxpose.xlu0.b32.cont [14/16] 0.0, 128
        %1918 = vxpose.xlu0.b32.cont [15/16] 0.0, 128
        %1919 = vxpose.xlu0.b32.end [16/16] 0.0, 128
        %v1920 = vpop.trf.xlu0
        %v1921 = vpop.trf.xlu0
        %v1922 = vpop.trf.xlu0
        %v1923 = vpop.trf.xlu0
        %v1924 = vpop.trf.xlu0
        %v1925 = vpop.trf.xlu0
        %v1926 = vpop.trf.xlu0
        %v1927 = vpop.trf.xlu0
        %v1928 = vpop.trf.xlu0
        %v1929 = vpop.trf.xlu0
        %v1930 = vpop.trf.xlu0
        %v1931 = vpop.trf.xlu0
        %v1932 = vpop.trf.xlu0
        %v1933 = vpop.trf.xlu0
        %v1934 = vpop.trf.xlu0
        %v1935 = vpop.trf.xlu0
        %vm1936 = vcmp.gt.f32.partialorder %v1920, 0.4
        %v1937 = vsel %vm1936, 2.0, 1.0
        %v1938 = vsel %vm1287, %v1937, 1.0
        %v1939 = vld [vmem:[%s235] sm:$0xff]
        %v1940 = vld [vmem:[%s235 + $0x8] sm:$0xff]
        %v1941 = vld [vmem:[%s235 + $0x10] sm:$0xff]
        %v1942 = vld [vmem:[%s235 + $0x18] sm:$0xff]
        %v1943 = vld [vmem:[%s235 + $0x20] sm:$0xff]
        %v1944 = vld [vmem:[%s235 + $0x28] sm:$0xff]
        %v1945 = vld [vmem:[%s235 + $0x30] sm:$0xff]
        %v1946 = vld [vmem:[%s235 + $0x38] sm:$0xff]
        %v1947 = vld [vmem:[%s235 + $0x40] sm:$0xff]
        %v1948 = vld [vmem:[%s235 + $0x48] sm:$0xff]
        %v1949 = vld [vmem:[%s235 + $0x50] sm:$0xff]
        %v1950 = vld [vmem:[%s235 + $0x58] sm:$0xff]
        %v1951 = vld [vmem:[%s235 + $0x60] sm:$0xff]
        %v1952 = vld [vmem:[%s235 + $0x68] sm:$0xff]
        %v1953 = vld [vmem:[%s235 + $0x70] sm:$0xff]
        %v1954 = vld [vmem:[%s235 + $0x78] sm:$0xff]
        %v1955 = vld [vmem:[%s235 + $0x80] sm:$0xff]
        %v1956 = vld [vmem:[%s235 + $0x88] sm:$0xff]
        %v1957 = vld [vmem:[%s235 + $0x90] sm:$0xff]
        %v1958 = vld [vmem:[%s235 + $0x98] sm:$0xff]
        %v1959 = vld [vmem:[%s235 + $0xa0] sm:$0xff]
        %v1960 = vld [vmem:[%s235 + $0xa8] sm:$0xff]
        %v1961 = vld [vmem:[%s235 + $0xb0] sm:$0xff]
        %v1962 = vld [vmem:[%s235 + $0xb8] sm:$0xff]
        %v1963 = vld [vmem:[%s235 + $0xc0] sm:$0xff]
        %v1964 = vld [vmem:[%s235 + $0xc8] sm:$0xff]
        %v1965 = vld [vmem:[%s235 + $0xd0] sm:$0xff]
        %v1966 = vld [vmem:[%s235 + $0xd8] sm:$0xff]
        %v1967 = vld [vmem:[%s235 + $0xe0] sm:$0xff]
        %v1968 = vld [vmem:[%s235 + $0xe8] sm:$0xff]
        %v1969 = vld [vmem:[%s235 + $0xf0] sm:$0xff]
        %v1970 = vld [vmem:[%s235 + $0xf8] sm:$0xff]
        %v1971 = vld [vmem:[%s235 + $0x100] sm:$0x1]
        %v1972 = vlaneseq
        %v1973 = vshrl.u32 %v1972, 7
        %v1974 = vsub.s32 0, %v1973
        %v1975 = vrot.slane %v1938, %v1974
        %v1976 = vmul.f32 %v1939, %v1975
        %v1977 = vmul.f32 %v1940, %v1975
        %v1978 = vmul.f32 %v1941, %v1975
        %v1979 = vmul.f32 %v1942, %v1975
        %v1980 = vmul.f32 %v1943, %v1975
        %v1981 = vmul.f32 %v1944, %v1975
        %v1982 = vmul.f32 %v1945, %v1975
        %v1983 = vmul.f32 %v1946, %v1975
        %v1984 = vmul.f32 %v1947, %v1975
        %v1985 = vmul.f32 %v1948, %v1975
        %v1986 = vmul.f32 %v1949, %v1975
        %v1987 = vmul.f32 %v1950, %v1975
        %v1988 = vmul.f32 %v1951, %v1975
        %v1989 = vmul.f32 %v1952, %v1975
        %v1990 = vmul.f32 %v1953, %v1975
        %v1991 = vmul.f32 %v1954, %v1975
        %v1992 = vmul.f32 %v1955, %v1975
        %v1993 = vmul.f32 %v1956, %v1975
        %v1994 = vmul.f32 %v1957, %v1975
        %v1995 = vmul.f32 %v1958, %v1975
        %v1996 = vmul.f32 %v1959, %v1975
        %v1997 = vmul.f32 %v1960, %v1975
        %v1998 = vmul.f32 %v1961, %v1975
        %v1999 = vmul.f32 %v1962, %v1975
        %v2000 = vmul.f32 %v1963, %v1975
        %v2001 = vmul.f32 %v1964, %v1975
        %v2002 = vmul.f32 %v1965, %v1975
        %v2003 = vmul.f32 %v1966, %v1975
        %v2004 = vmul.f32 %v1967, %v1975
        %v2005 = vmul.f32 %v1968, %v1975
        %v2006 = vmul.f32 %v1969, %v1975
        %v2007 = vmul.f32 %v1970, %v1975
        %v2008 = vmul.f32 %v1971, %v1975
        %2009 = vxpose.xlu0.b32.start [1/16] %v1976, 128
        %2010 = vxpose.xlu0.b32.cont [2/16] %v1977, 128
        %2011 = vxpose.xlu0.b32.cont [3/16] %v1978, 128
        %2012 = vxpose.xlu0.b32.cont [4/16] %v1979, 128
        %2013 = vxpose.xlu0.b32.cont [5/16] %v1980, 128
        %2014 = vxpose.xlu0.b32.cont [6/16] %v1981, 128
        %2015 = vxpose.xlu0.b32.cont [7/16] %v1982, 128
        %2016 = vxpose.xlu0.b32.cont [8/16] %v1983, 128
        %2017 = vxpose.xlu0.b32.cont [9/16] %v1984, 128
        %2018 = vxpose.xlu0.b32.cont [10/16] %v1985, 128
        %2019 = vxpose.xlu0.b32.cont [11/16] %v1986, 128
        %2020 = vxpose.xlu0.b32.cont [12/16] %v1987, 128
        %2021 = vxpose.xlu0.b32.cont [13/16] %v1988, 128
        %2022 = vxpose.xlu0.b32.cont [14/16] %v1989, 128
        %2023 = vxpose.xlu0.b32.cont [15/16] %v1990, 128
        %2024 = vxpose.xlu0.b32.end [16/16] %v1991, 128
        %v2025 = vpop.trf.xlu0
        %v2026 = vpop.trf.xlu0
        %v2027 = vpop.trf.xlu0
        %v2028 = vpop.trf.xlu0
        %v2029 = vpop.trf.xlu0
        %v2030 = vpop.trf.xlu0
        %v2031 = vpop.trf.xlu0
        %v2032 = vpop.trf.xlu0
        %v2033 = vpop.trf.xlu0
        %v2034 = vpop.trf.xlu0
        %v2035 = vpop.trf.xlu0
        %v2036 = vpop.trf.xlu0
        %v2037 = vpop.trf.xlu0
        %v2038 = vpop.trf.xlu0
        %v2039 = vpop.trf.xlu0
        %v2040 = vpop.trf.xlu0
        %2041 = vxpose.xlu0.b32.start [1/16] %v1992, 128
        %2042 = vxpose.xlu0.b32.cont [2/16] %v1993, 128
        %2043 = vxpose.xlu0.b32.cont [3/16] %v1994, 128
        %2044 = vxpose.xlu0.b32.cont [4/16] %v1995, 128
        %2045 = vxpose.xlu0.b32.cont [5/16] %v1996, 128
        %2046 = vxpose.xlu0.b32.cont [6/16] %v1997, 128
        %2047 = vxpose.xlu0.b32.cont [7/16] %v1998, 128
        %2048 = vxpose.xlu0.b32.cont [8/16] %v1999, 128
        %2049 = vxpose.xlu0.b32.cont [9/16] %v2000, 128
        %2050 = vxpose.xlu0.b32.cont [10/16] %v2001, 128
        %2051 = vxpose.xlu0.b32.cont [11/16] %v2002, 128
        %2052 = vxpose.xlu0.b32.cont [12/16] %v2003, 128
        %2053 = vxpose.xlu0.b32.cont [13/16] %v2004, 128
        %2054 = vxpose.xlu0.b32.cont [14/16] %v2005, 128
        %2055 = vxpose.xlu0.b32.cont [15/16] %v2006, 128
        %2056 = vxpose.xlu0.b32.end [16/16] %v2007, 128
        %v2057 = vpop.trf.xlu0
        %v2058 = vpop.trf.xlu0
        %v2059 = vpop.trf.xlu0
        %v2060 = vpop.trf.xlu0
        %v2061 = vpop.trf.xlu0
        %v2062 = vpop.trf.xlu0
        %v2063 = vpop.trf.xlu0
        %v2064 = vpop.trf.xlu0
        %v2065 = vpop.trf.xlu0
        %v2066 = vpop.trf.xlu0
        %v2067 = vpop.trf.xlu0
        %v2068 = vpop.trf.xlu0
        %v2069 = vpop.trf.xlu0
        %v2070 = vpop.trf.xlu0
        %v2071 = vpop.trf.xlu0
        %v2072 = vpop.trf.xlu0
        %2073 = vxpose.xlu0.b32.start [1/16] %v2008, 128
        %2074 = vxpose.xlu0.b32.cont [2/16] 0.0, 128
        %2075 = vxpose.xlu0.b32.cont [3/16] 0.0, 128
        %2076 = vxpose.xlu0.b32.cont [4/16] 0.0, 128
        %2077 = vxpose.xlu0.b32.cont [5/16] 0.0, 128
        %2078 = vxpose.xlu0.b32.cont [6/16] 0.0, 128
        %2079 = vxpose.xlu0.b32.cont [7/16] 0.0, 128
        %2080 = vxpose.xlu0.b32.cont [8/16] 0.0, 128
        %2081 = vxpose.xlu0.b32.cont [9/16] 0.0, 128
        %2082 = vxpose.xlu0.b32.cont [10/16] 0.0, 128
        %2083 = vxpose.xlu0.b32.cont [11/16] 0.0, 128
        %2084 = vxpose.xlu0.b32.cont [12/16] 0.0, 128
        %2085 = vxpose.xlu0.b32.cont [13/16] 0.0, 128
        %2086 = vxpose.xlu0.b32.cont [14/16] 0.0, 128
        %2087 = vxpose.xlu0.b32.cont [15/16] 0.0, 128
        %2088 = vxpose.xlu0.b32.end [16/16] 0.0, 128
        %v2089 = vpop.trf.xlu0
        %v2090 = vpop.trf.xlu0
        %v2091 = vpop.trf.xlu0
        %v2092 = vpop.trf.xlu0
        %v2093 = vpop.trf.xlu0
        %v2094 = vpop.trf.xlu0
        %v2095 = vpop.trf.xlu0
        %v2096 = vpop.trf.xlu0
        %v2097 = vpop.trf.xlu0
        %v2098 = vpop.trf.xlu0
        %v2099 = vpop.trf.xlu0
        %v2100 = vpop.trf.xlu0
        %v2101 = vpop.trf.xlu0
        %v2102 = vpop.trf.xlu0
        %v2103 = vpop.trf.xlu0
        %v2104 = vpop.trf.xlu0
        %2105 = vst [vmem:[%s229] sm:$0xff] %v2025
        %2106 = vst [vmem:[%s229 + $0x8] sm:$0xff] %v2057
        %2107 = vst.msk [vmem:[%s229 + $0x10] sm:$0xff] %vm1385, %v2089
        %v2108 = vsel %vm1288, %v1937, 1.0
        %s2109 = scalar_lea.vmem %s235, 264
        %v2110 = vld [vmem:[%s2109] sm:$0xff]
        %v2111 = vld [vmem:[%s2109 + $0x8] sm:$0xff]
        %v2112 = vld [vmem:[%s2109 + $0x10] sm:$0xff]
        %v2113 = vld [vmem:[%s2109 + $0x18] sm:$0xff]
        %v2114 = vld [vmem:[%s2109 + $0x20] sm:$0xff]
        %v2115 = vld [vmem:[%s2109 + $0x28] sm:$0xff]
        %v2116 = vld [vmem:[%s2109 + $0x30] sm:$0xff]
        %v2117 = vld [vmem:[%s2109 + $0x38] sm:$0xff]
        %v2118 = vld [vmem:[%s2109 + $0x40] sm:$0xff]
        %v2119 = vld [vmem:[%s2109 + $0x48] sm:$0xff]
        %v2120 = vld [vmem:[%s2109 + $0x50] sm:$0xff]
        %v2121 = vld [vmem:[%s2109 + $0x58] sm:$0xff]
        %v2122 = vld [vmem:[%s2109 + $0x60] sm:$0xff]
        %v2123 = vld [vmem:[%s2109 + $0x68] sm:$0xff]
        %v2124 = vld [vmem:[%s2109 + $0x70] sm:$0xff]
        %v2125 = vld [vmem:[%s2109 + $0x78] sm:$0xff]
        %v2126 = vld [vmem:[%s2109 + $0x80] sm:$0xff]
        %v2127 = vld [vmem:[%s2109 + $0x88] sm:$0xff]
        %v2128 = vld [vmem:[%s2109 + $0x90] sm:$0xff]
        %v2129 = vld [vmem:[%s2109 + $0x98] sm:$0xff]
        %v2130 = vld [vmem:[%s2109 + $0xa0] sm:$0xff]
        %v2131 = vld [vmem:[%s2109 + $0xa8] sm:$0xff]
        %v2132 = vld [vmem:[%s2109 + $0xb0] sm:$0xff]
        %v2133 = vld [vmem:[%s2109 + $0xb8] sm:$0xff]
        %v2134 = vld [vmem:[%s2109 + $0xc0] sm:$0xff]
        %v2135 = vld [vmem:[%s2109 + $0xc8] sm:$0xff]
        %v2136 = vld [vmem:[%s2109 + $0xd0] sm:$0xff]
        %v2137 = vld [vmem:[%s2109 + $0xd8] sm:$0xff]
        %v2138 = vld [vmem:[%s2109 + $0xe0] sm:$0xff]
        %v2139 = vld [vmem:[%s2109 + $0xe8] sm:$0xff]
        %v2140 = vld [vmem:[%s2109 + $0xf0] sm:$0xff]
        %v2141 = vld [vmem:[%s2109 + $0xf8] sm:$0xff]
        %v2142 = vld [vmem:[%s2109 + $0x100] sm:$0x1]
        %v2143 = vlaneseq
        %v2144 = vshrl.u32 %v2143, 7
        %v2145 = vsub.s32 1, %v2144
        %v2146 = vrot.slane %v2108, %v2145
        %v2147 = vmul.f32 %v2110, %v2146
        %v2148 = vmul.f32 %v2111, %v2146
        %v2149 = vmul.f32 %v2112, %v2146
        %v2150 = vmul.f32 %v2113, %v2146
        %v2151 = vmul.f32 %v2114, %v2146
        %v2152 = vmul.f32 %v2115, %v2146
        %v2153 = vmul.f32 %v2116, %v2146
        %v2154 = vmul.f32 %v2117, %v2146
        %v2155 = vmul.f32 %v2118, %v2146
        %v2156 = vmul.f32 %v2119, %v2146
        %v2157 = vmul.f32 %v2120, %v2146
        %v2158 = vmul.f32 %v2121, %v2146
        %v2159 = vmul.f32 %v2122, %v2146
        %v2160 = vmul.f32 %v2123, %v2146
        %v2161 = vmul.f32 %v2124, %v2146
        %v2162 = vmul.f32 %v2125, %v2146
        %v2163 = vmul.f32 %v2126, %v2146
        %v2164 = vmul.f32 %v2127, %v2146
        %v2165 = vmul.f32 %v2128, %v2146
        %v2166 = vmul.f32 %v2129, %v2146
        %v2167 = vmul.f32 %v2130, %v2146
        %v2168 = vmul.f32 %v2131, %v2146
        %v2169 = vmul.f32 %v2132, %v2146
        %v2170 = vmul.f32 %v2133, %v2146
        %v2171 = vmul.f32 %v2134, %v2146
        %v2172 = vmul.f32 %v2135, %v2146
        %v2173 = vmul.f32 %v2136, %v2146
        %v2174 = vmul.f32 %v2137, %v2146
        %v2175 = vmul.f32 %v2138, %v2146
        %v2176 = vmul.f32 %v2139, %v2146
        %v2177 = vmul.f32 %v2140, %v2146
        %v2178 = vmul.f32 %v2141, %v2146
        %v2179 = vmul.f32 %v2142, %v2146
        %2180 = vxpose.xlu0.b32.start [1/16] %v2147, 128
        %2181 = vxpose.xlu0.b32.cont [2/16] %v2148, 128
        %2182 = vxpose.xlu0.b32.cont [3/16] %v2149, 128
        %2183 = vxpose.xlu0.b32.cont [4/16] %v2150, 128
        %2184 = vxpose.xlu0.b32.cont [5/16] %v2151, 128
        %2185 = vxpose.xlu0.b32.cont [6/16] %v2152, 128
        %2186 = vxpose.xlu0.b32.cont [7/16] %v2153, 128
        %2187 = vxpose.xlu0.b32.cont [8/16] %v2154, 128
        %2188 = vxpose.xlu0.b32.cont [9/16] %v2155, 128
        %2189 = vxpose.xlu0.b32.cont [10/16] %v2156, 128
        %2190 = vxpose.xlu0.b32.cont [11/16] %v2157, 128
        %2191 = vxpose.xlu0.b32.cont [12/16] %v2158, 128
        %2192 = vxpose.xlu0.b32.cont [13/16] %v2159, 128
        %2193 = vxpose.xlu0.b32.cont [14/16] %v2160, 128
        %2194 = vxpose.xlu0.b32.cont [15/16] %v2161, 128
        %2195 = vxpose.xlu0.b32.end [16/16] %v2162, 128
        %v2196 = vpop.trf.xlu0
        %v2197 = vpop.trf.xlu0
        %v2198 = vpop.trf.xlu0
        %v2199 = vpop.trf.xlu0
        %v2200 = vpop.trf.xlu0
        %v2201 = vpop.trf.xlu0
        %v2202 = vpop.trf.xlu0
        %v2203 = vpop.trf.xlu0
        %v2204 = vpop.trf.xlu0
        %v2205 = vpop.trf.xlu0
        %v2206 = vpop.trf.xlu0
        %v2207 = vpop.trf.xlu0
        %v2208 = vpop.trf.xlu0
        %v2209 = vpop.trf.xlu0
        %v2210 = vpop.trf.xlu0
        %v2211 = vpop.trf.xlu0
        %2212 = vxpose.xlu0.b32.start [1/16] %v2163, 128
        %2213 = vxpose.xlu0.b32.cont [2/16] %v2164, 128
        %2214 = vxpose.xlu0.b32.cont [3/16] %v2165, 128
        %2215 = vxpose.xlu0.b32.cont [4/16] %v2166, 128
        %2216 = vxpose.xlu0.b32.cont [5/16] %v2167, 128
        %2217 = vxpose.xlu0.b32.cont [6/16] %v2168, 128
        %2218 = vxpose.xlu0.b32.cont [7/16] %v2169, 128
        %2219 = vxpose.xlu0.b32.cont [8/16] %v2170, 128
        %2220 = vxpose.xlu0.b32.cont [9/16] %v2171, 128
        %2221 = vxpose.xlu0.b32.cont [10/16] %v2172, 128
        %2222 = vxpose.xlu0.b32.cont [11/16] %v2173, 128
        %2223 = vxpose.xlu0.b32.cont [12/16] %v2174, 128
        %2224 = vxpose.xlu0.b32.cont [13/16] %v2175, 128
        %2225 = vxpose.xlu0.b32.cont [14/16] %v2176, 128
        %2226 = vxpose.xlu0.b32.cont [15/16] %v2177, 128
        %2227 = vxpose.xlu0.b32.end [16/16] %v2178, 128
        %v2228 = vpop.trf.xlu0
        %v2229 = vpop.trf.xlu0
        %v2230 = vpop.trf.xlu0
        %v2231 = vpop.trf.xlu0
        %v2232 = vpop.trf.xlu0
        %v2233 = vpop.trf.xlu0
        %v2234 = vpop.trf.xlu0
        %v2235 = vpop.trf.xlu0
        %v2236 = vpop.trf.xlu0
        %v2237 = vpop.trf.xlu0
        %v2238 = vpop.trf.xlu0
        %v2239 = vpop.trf.xlu0
        %v2240 = vpop.trf.xlu0
        %v2241 = vpop.trf.xlu0
        %v2242 = vpop.trf.xlu0
        %v2243 = vpop.trf.xlu0
        %2244 = vxpose.xlu0.b32.start [1/16] %v2179, 128
        %2245 = vxpose.xlu0.b32.cont [2/16] 0.0, 128
        %2246 = vxpose.xlu0.b32.cont [3/16] 0.0, 128
        %2247 = vxpose.xlu0.b32.cont [4/16] 0.0, 128
        %2248 = vxpose.xlu0.b32.cont [5/16] 0.0, 128
        %2249 = vxpose.xlu0.b32.cont [6/16] 0.0, 128
        %2250 = vxpose.xlu0.b32.cont [7/16] 0.0, 128
        %2251 = vxpose.xlu0.b32.cont [8/16] 0.0, 128
        %2252 = vxpose.xlu0.b32.cont [9/16] 0.0, 128
        %2253 = vxpose.xlu0.b32.cont [10/16] 0.0, 128
        %2254 = vxpose.xlu0.b32.cont [11/16] 0.0, 128
        %2255 = vxpose.xlu0.b32.cont [12/16] 0.0, 128
        %2256 = vxpose.xlu0.b32.cont [13/16] 0.0, 128
        %2257 = vxpose.xlu0.b32.cont [14/16] 0.0, 128
        %2258 = vxpose.xlu0.b32.cont [15/16] 0.0, 128
        %2259 = vxpose.xlu0.b32.end [16/16] 0.0, 128
        %v2260 = vpop.trf.xlu0
        %v2261 = vpop.trf.xlu0
        %v2262 = vpop.trf.xlu0
        %v2263 = vpop.trf.xlu0
        %v2264 = vpop.trf.xlu0
        %v2265 = vpop.trf.xlu0
        %v2266 = vpop.trf.xlu0
        %v2267 = vpop.trf.xlu0
        %v2268 = vpop.trf.xlu0
        %v2269 = vpop.trf.xlu0
        %v2270 = vpop.trf.xlu0
        %v2271 = vpop.trf.xlu0
        %v2272 = vpop.trf.xlu0
        %v2273 = vpop.trf.xlu0
        %v2274 = vpop.trf.xlu0
        %v2275 = vpop.trf.xlu0
        %s2276 = scalar_lea.vmem %s229, 24 [#allocation3]
        %2277 = vst [vmem:[%s2276] sm:$0xff] %v2196
        %2278 = vst [vmem:[%s2276 + $0x8] sm:$0xff] %v2228
        %2279 = vst.msk [vmem:[%s2276 + $0x10] sm:$0xff] %vm1385, %v2260
        %s2280 = sand.u32 %s125, 1
        %s2281 = scalar_lea.sflag [#allocation4], %s2280
        %s2282 = sand.u32 %s125, 1
        %s2283 = smul.addr %s2282, 48
        %s2284 = scalar_lea.vmem [#allocation3], %s2283
        // Predicated region
        $region37: #{weight_loss.1} parent=35 // pred_check
          %p2285 = pneg %p135
        $region38: #{weight_loss.1} parent=35 // pred_check_branch
          %2287 = sbr.rel (%p2285) target = $region40
        $region39: #{weight_loss.1} parent=35 // pred_region
          %s2288 = smul.u32 2, %s18
          %s2290 = ssub.s32 768, 768
          %2291 = vsyncadd %s2281, %s2290
          %s2292 = smul.addr %s2288, 3
          %s2293 = smul.addr %s2292, 128
          %s2294 = scalar_lea.hbm %s4, %s2293
          %s2295 = sshll.u32 %s2284, 4
          %s2296 = int_to_ptr.vmem [resolvable:$true] %s2295
          %2301 = dma.vmem_to_hbm [thread:$0]  %s2296, 768, %s2294, %s2281, 384, 384, 24
        $region40: #{weight_loss.1} parent=35 // pred_fallthru
          _
      $region36: #{weight_loss.1} parent=5 // pred_fallthru
        _
      %p2302 = scmp.le.s32.totalorder 2, %s13
      // Predicated region
      $region41: #{weight_loss.1} parent=5 // pred_check
        %p2303 = pneg %p2302
      $region42: #{weight_loss.1} parent=5 // pred_check_branch
        %2305 = sbr.rel (%p2303) target = $region44
      $region43: #{weight_loss.1} parent=5 // pred_region
        %s2306 = ssub.s32 %s13, 2
        // Predicated region
        $region45: #{weight_loss.1} parent=43 // pred_check
          %p2307 = pneg %p141
        $region46: #{weight_loss.1} parent=43 // pred_check_branch
          %2309 = sbr.rel (%p2307) target = $region48
        $region47: #{weight_loss.1} parent=43 // pred_region
          %s2310 = sand.u32 %s126, 1
          %s2311 = scalar_lea.sflag [#allocation4], %s2310
          %s2312 = sand.u32 %s126, 1
          %s2313 = smul.addr %s2312, 48
          %s2314 = scalar_lea.vmem [#allocation3], %s2313
          %2315 = dma.done %s2311, 768
        $region48: #{weight_loss.1} parent=43 // pred_fallthru
          _
      $region44: #{weight_loss.1} parent=5 // pred_fallthru
        _
    $region6: #{weight_loss.1} parent=1 // loop_footer
      %s17 = sadd.s32 1, %s13
    $region7: #{weight_loss.1} parent=1 // loop_footer_branch
      %12 = sbr.rel target = $region3
    $region8: #{weight_loss.1} parent=1 // loop_exit
      _
    %2316 = vsyncpa [#allocation4], 1
    %s2317 = scalar_lea.sflag [#allocation4], 1
    %2318 = vsyncpa %s2317, 1

</llo_original>
